<compile_context>
chip_gen: v7x
topology: tpu7x:2x2x1
jax: 0.10.0
libtpu: 0.0.40
codegen_flags: <defaults>
</compile_context>

<pallas_src>
import functools

import jax
import jax.numpy as jnp
from jax import lax
from jax.experimental import pallas as pl
from jax.experimental.pallas import tpu as pltpu


def _lstm_proj_kernel(x_ref, wih_ref, whh_ref, b_ref, wp_ref, bp_ref,
                      y_ref, gx_sc, h_sc, *, T, Bp, P, H):
    """Single-invocation kernel: full LSTM recurrence + deferred projection.

    x_ref  : (T*Bp, Dp)    time-major input, batch zero-padded to Bp sublanes,
                           features zero-padded to Dp lanes
    wih_ref: (Dp, 4*H)     input->gate weights, dense i|f|g|o gate columns
    whh_ref: (H, 4*H)      hidden->gate weights (g columns pre-scaled by 2)
    b_ref  : (1, 4*H)      b_ih + b_hh (g columns pre-scaled by 2)
    wp_ref : (H, 128)      projection weight, only column 0 nonzero
    bp_ref : (1, 1)        projection bias (SMEM scalar)
    y_ref  : (P*Bp, 128)   lane-dense projected output (column 0 meaningful)
    gx_sc  : (T*Bp, 4*H)   VMEM scratch: precomputed x @ W_ih + b
    h_sc   : (P*Bp, H)     VMEM scratch: hidden states of the last P steps
    """
    # (1) Input-side matmul for ALL timesteps in one MXU shot (off serial path).
    gx_sc[...] = (jnp.dot(x_ref[...], wih_ref[...],
                          preferred_element_type=jnp.float32) + b_ref[...])

    h = jnp.zeros((Bp, H), jnp.float32)
    c = jnp.zeros((Bp, H), jnp.float32)

    # (2) Recurrence, fully unrolled at trace time (T is static).  W_hh is
    #     indexed from VMEM *inside* the per-step dot so Mosaic streams it
    #     rather than holding the whole weight live in vregs across the unroll.
    for t in range(T):
        row = t * Bp
        gates = gx_sc[pl.ds(row, Bp), :] + jnp.dot(
            h, whh_ref[...], preferred_element_type=jnp.float32)   # (Bp, 4H)
        # Dense gate layout i|f|g|o.  The g-gate columns were pre-scaled by 2
        # in pack_params, so one slab-wide sigmoid covers all gates and
        # tanh(x) is recovered as 2*sigmoid(2x) - 1 on the VPU.
        s = jax.nn.sigmoid(gates)
        i_g = s[:, 0 * H:1 * H]
        f_g = s[:, 1 * H:2 * H]
        g_g = 2.0 * s[:, 2 * H:3 * H] - 1.0
        o_g = s[:, 3 * H:4 * H]
        c = f_g * c + i_g * g_g
        h = o_g * jnp.tanh(c)
        if t >= T - P:                          # only stash steps we project
            h_sc[pl.ds((t - (T - P)) * Bp, Bp), :] = h

    # (3) Dropout(0.1) in eval mode == identity.
    # TODO(synk): training-mode stochastic dropout not implemented (identity).
    # (4) Single lane-dense projection over the last P hidden states; wp has
    #     only column 0 nonzero so the output store is an unmasked 128-lane tile.
    y_ref[...] = (jnp.dot(h_sc[...], wp_ref[...],
                          preferred_element_type=jnp.float32) + bp_ref[0, 0])


def init_params(key, input_dim, hidden_dim):
    """PyTorch-layout LSTM + Linear params, U(-1/sqrt(H), 1/sqrt(H)) init."""
    k = 1.0 / jnp.sqrt(jnp.float32(hidden_dim))
    ks = jax.random.split(key, 6)
    return {
        "w_ih": jax.random.uniform(ks[0], (4 * hidden_dim, input_dim),
                                   jnp.float32, -k, k),
        "w_hh": jax.random.uniform(ks[1], (4 * hidden_dim, hidden_dim),
                                   jnp.float32, -k, k),
        "b_ih": jax.random.uniform(ks[2], (4 * hidden_dim,), jnp.float32, -k, k),
        "b_hh": jax.random.uniform(ks[3], (4 * hidden_dim,), jnp.float32, -k, k),
        "w_proj": jax.random.uniform(ks[4], (1, hidden_dim), jnp.float32, -k, k),
        "b_proj": jax.random.uniform(ks[5], (1,), jnp.float32, -k, k),
    }


def pack_params(params, hidden_dim, input_pad=128):
    """Repack PyTorch-layout params into dense, lane-aligned kernel layouts.

    Gates are packed densely (4*H lanes, order i|f|g|o) with no per-gate lane
    padding; the g-gate columns are pre-scaled by 2 so tanh can be computed as
    2*sigmoid(2x)-1 from one slab-wide sigmoid in the kernel.
    """
    H = hidden_dim
    D = params["w_ih"].shape[1]
    assert (4 * H) % 128 == 0, (
        "dense gate packing needs 4*hidden_dim to be a multiple of 128")
    Dp = max(input_pad, ((D + 7) // 8) * 8)

    g_scale = jnp.concatenate([
        jnp.ones((2 * H,), jnp.float32),        # i, f
        jnp.full((H,), 2.0, jnp.float32),       # g (tanh-as-sigmoid)
        jnp.ones((H,), jnp.float32)])           # o

    wih = params["w_ih"].T * g_scale[None, :]               # (D, 4H)
    wih = jnp.pad(wih, ((0, Dp - D), (0, 0)))               # (Dp, 4H)

    whh = params["w_hh"].T * g_scale[None, :]               # (H, 4H)

    bias = ((params["b_ih"] + params["b_hh"]) * g_scale).reshape(1, 4 * H)

    wp = jnp.zeros((H, 128), jnp.float32).at[:, 0].set(params["w_proj"][0, :])
    bp = params["b_proj"].reshape(1, 1)
    return {"wih": wih, "whh": whh, "bias": bias, "wp": wp, "bp": bp}


def mock_timellm_forward(batch_x, batch_x_mark, batch_y, batch_y_mark,
                         kparams, pred_len):
    # batch_x_mark / batch_y / batch_y_mark unused (matches the PyTorch forward).
    del batch_x_mark, batch_y, batch_y_mark
    B, T, D = batch_x.shape
    H = kparams["whh"].shape[0]
    Dp = kparams["wih"].shape[0]
    P = pred_len
    assert P <= T
    Bp = max(8, ((B + 7) // 8) * 8)          # sublane-aligned batch

    # time-major, zero-pad batch to Bp sublanes and features to Dp lanes,
    # flatten to (T*Bp, Dp)
    x_tm = jnp.transpose(batch_x.astype(jnp.float32), (1, 0, 2))    # (T, B, D)
    x_tm = jnp.pad(x_tm, ((0, 0), (0, Bp - B), (0, Dp - D)))
    x_flat = x_tm.reshape(T * Bp, Dp)

    kernel = functools.partial(_lstm_proj_kernel, T=T, Bp=Bp, P=P, H=H)
    vmem = pl.BlockSpec(memory_space=pltpu.MemorySpace.VMEM)
    smem = pl.BlockSpec(memory_space=pltpu.MemorySpace.SMEM)

    flops = (2 * T * Bp * Dp * 4 * H          # x @ W_ih (one shot)
             + 2 * T * Bp * H * 4 * H         # h @ W_hh (per step, serial)
             + 2 * P * Bp * H * 128)          # lane-dense projection
    transcendentals = T * Bp * (4 * H + H)    # slab sigmoid + tanh(c) per step
    bytes_accessed = 4 * (T * Bp * Dp + Dp * 4 * H + H * 4 * H
                          + 4 * H + H * 128 + 1 + P * Bp * 128)

    y = pl.pallas_call(
        kernel,
        out_shape=jax.ShapeDtypeStruct((P * Bp, 128), jnp.float32),
        in_specs=[vmem, vmem, vmem, vmem, vmem, smem],
        out_specs=vmem,
        scratch_shapes=[
            pltpu.VMEM((T * Bp, 4 * H), jnp.float32),   # gx = x @ W_ih + b
            pltpu.VMEM((P * Bp, H), jnp.float32),       # last-P hidden states
        ],
        cost_estimate=pl.CostEstimate(flops=flops,
                                      transcendentals=transcendentals,
                                      bytes_accessed=bytes_accessed),
    )(x_flat, kparams["wih"], kparams["whh"], kparams["bias"],
      kparams["wp"], kparams["bp"])

    # (P*Bp, 128): column 0 is the projection, time-major.
    # -> (B, P, 1) batch-first, real batch rows only.
    y = y[:, 0].reshape(P, Bp)[:, :B]                 # (P, B)
    return jnp.transpose(y, (1, 0))[:, :, None]       # (B, P, 1)


def reference_forward(batch_x, params, pred_len):
    """Pure-JAX reference with PyTorch nn.LSTM + Linear semantics (eval mode)."""
    H = params["w_hh"].shape[1]
    w_ih_t = params["w_ih"].T
    w_hh_t = params["w_hh"].T
    bias = params["b_ih"] + params["b_hh"]

    def cell(carry, x_t):
        h, c = carry
        g = x_t @ w_ih_t + h @ w_hh_t + bias
        i = jax.nn.sigmoid(g[:, 0 * H:1 * H])
        f = jax.nn.sigmoid(g[:, 1 * H:2 * H])
        gg = jnp.tanh(g[:, 2 * H:3 * H])
        o = jax.nn.sigmoid(g[:, 3 * H:4 * H])
        c = f * c + i * gg
        h = o * jnp.tanh(c)
        return (h, c), h

    B = batch_x.shape[0]
    h0 = jnp.zeros((B, H), jnp.float32)
    c0 = jnp.zeros((B, H), jnp.float32)
    _, hs = lax.scan(cell, (h0, c0), jnp.transpose(batch_x, (1, 0, 2)))
    y = hs @ params["w_proj"].T + params["b_proj"]    # (T, B, 1)
    return jnp.transpose(y, (1, 0, 2))[:, -pred_len:, :]


if __name__ == "__main__":
    B, T, D, H, PRED_LEN = 4, 16, 26, 64, 7

    key = jax.random.PRNGKey(0)
    k_params, k_x, k_xm, k_y, k_ym = jax.random.split(key, 5)

    params = init_params(k_params, D, H)
    kparams = pack_params(params, H)

    batch_x = jax.random.normal(k_x, (B, T, D), jnp.float32)
    batch_x_mark = jax.random.normal(k_xm, (B, T, 4), jnp.float32)         # unused
    batch_y = jax.random.normal(k_y, (B, PRED_LEN, 1), jnp.float32)        # unused
    batch_y_mark = jax.random.normal(k_ym, (B, PRED_LEN, 4), jnp.float32)  # unused

    out = mock_timellm_forward(batch_x, batch_x_mark, batch_y, batch_y_mark,
                               kparams, PRED_LEN)
    out = jax.block_until_ready(out)

    assert out.shape == (B, PRED_LEN, 1), out.shape
    assert bool(jnp.all(jnp.isfinite(out)))

    ref = reference_forward(batch_x, params, PRED_LEN)
    assert jnp.allclose(out, ref, atol=5e-3, rtol=5e-3), \
        float(jnp.max(jnp.abs(out - ref)))

    print("KERNEL_OK")
</pallas_src>

<mosaic_0001>
module attributes {stable_mosaic.version = 11 : i64} {
  func.func @_lstm_proj_kernel(%arg0: memref<128x128xf32, #tpu.memory_space<vmem>>, %arg1: memref<128x256xf32, #tpu.memory_space<vmem>>, %arg2: memref<64x256xf32, #tpu.memory_space<vmem>>, %arg3: memref<1x256xf32, #tpu.memory_space<vmem>>, %arg4: memref<64x128xf32, #tpu.memory_space<vmem>>, %arg5: memref<1x1xf32, #tpu.memory_space<smem>>, %arg6: memref<56x128xf32, #tpu.memory_space<vmem>>, %arg7: memref<128x256xf32, #tpu.memory_space<vmem>>, %arg8: memref<56x64xf32, #tpu.memory_space<vmem>>) attributes {dimension_semantics = [], scalar_prefetch = 0 : i64, scratch_operands = 2 : i64, tpu.core_type = #tpu.core_type<tc>} {
    %c0 = arith.constant 0 : index
    %c0_0 = arith.constant 0 : index
    %0 = vector.load %arg0[%c0, %c0_0] : memref<128x128xf32, #tpu.memory_space<vmem>>, vector<128x128xf32>
    %c0_1 = arith.constant 0 : index
    %c0_2 = arith.constant 0 : index
    %1 = vector.load %arg1[%c0_1, %c0_2] : memref<128x256xf32, #tpu.memory_space<vmem>>, vector<128x256xf32>
    %cst = arith.constant dense<0.000000e+00> : vector<128x256xf32>
    %2 = tpu.matmul %0, %1, %cst {dimension_numbers = #tpu.dot_dimension_numbers<[1], [0], [0], [1], [0, 0, 1, 1], [], []>} : vector<128x128xf32>, vector<128x256xf32>, vector<128x256xf32> -> vector<128x256xf32>
    %c0_3 = arith.constant 0 : index
    %c0_4 = arith.constant 0 : index
    %3 = vector.load %arg3[%c0_3, %c0_4] : memref<1x256xf32, #tpu.memory_space<vmem>>, vector<1x256xf32>
    %4 = vector.broadcast %3 : vector<1x256xf32> to vector<128x256xf32>
    %5 = arith.addf %2, %4 : vector<128x256xf32>
    %c0_5 = arith.constant 0 : index
    %c0_6 = arith.constant 0 : index
    %6 = vector.load %arg7[%c0_5, %c0_6] : memref<128x256xf32, #tpu.memory_space<vmem>>, vector<128x256xf32>
    tpu.vector_store %arg7[%c0_5, %c0_6], %5 {strides = array<i32>} : memref<128x256xf32, #tpu.memory_space<vmem>>, vector<128x256xf32>,
    %cst_7 = arith.constant 0.000000e+00 : f32
    %7 = vector.broadcast %cst_7 : f32 to vector<8x64xf32>
    %cst_8 = arith.constant 0.000000e+00 : f32
    %8 = vector.broadcast %cst_8 : f32 to vector<8x64xf32>
    %c0_9 = arith.constant 0 : index
    %c0_10 = arith.constant 0 : index
    %9 = vector.load %arg7[%c0_9, %c0_10] : memref<128x256xf32, #tpu.memory_space<vmem>>, vector<8x256xf32>
    %c0_11 = arith.constant 0 : index
    %c0_12 = arith.constant 0 : index
    %10 = vector.load %arg2[%c0_11, %c0_12] : memref<64x256xf32, #tpu.memory_space<vmem>>, vector<64x256xf32>
    %cst_13 = arith.constant dense<0.000000e+00> : vector<8x256xf32>
    %11 = tpu.matmul %7, %10, %cst_13 {dimension_numbers = #tpu.dot_dimension_numbers<[1], [0], [0], [1], [0, 0, 1, 1], [], []>} : vector<8x64xf32>, vector<64x256xf32>, vector<8x256xf32> -> vector<8x256xf32>
    %12 = arith.addf %9, %11 : vector<8x256xf32>
    %13 = arith.negf %12 : vector<8x256xf32>
    %14 = math.exp %13 : vector<8x256xf32>
    %cst_14 = arith.constant 1.000000e+00 : f32
    %15 = vector.broadcast %cst_14 : f32 to vector<8x256xf32>
    %16 = arith.addf %15, %14 : vector<8x256xf32>
    %17 = arith.divf %15, %16 : vector<8x256xf32>
    %18 = vector.extract_strided_slice %17 {offsets = [0, 0], sizes = [8, 64], strides = [1, 1]} : vector<8x256xf32> to vector<8x64xf32>
    %19 = vector.extract_strided_slice %17 {offsets = [0, 64], sizes = [8, 64], strides = [1, 1]} : vector<8x256xf32> to vector<8x64xf32>
    %20 = vector.extract_strided_slice %17 {offsets = [0, 128], sizes = [8, 64], strides = [1, 1]} : vector<8x256xf32> to vector<8x64xf32>
    %cst_15 = arith.constant 2.000000e+00 : f32
    %21 = vector.broadcast %cst_15 : f32 to vector<8x64xf32>
    %22 = arith.mulf %21, %20 : vector<8x64xf32>
    %cst_16 = arith.constant 1.000000e+00 : f32
    %23 = vector.broadcast %cst_16 : f32 to vector<8x64xf32>
    %24 = arith.subf %22, %23 : vector<8x64xf32>
    %25 = vector.extract_strided_slice %17 {offsets = [0, 192], sizes = [8, 64], strides = [1, 1]} : vector<8x256xf32> to vector<8x64xf32>
    %26 = arith.mulf %19, %8 : vector<8x64xf32>
    %27 = arith.mulf %18, %24 : vector<8x64xf32>
    %28 = arith.addf %26, %27 : vector<8x64xf32>
    %29 = math.tanh %28 : vector<8x64xf32>
    %30 = arith.mulf %25, %29 : vector<8x64xf32>
    %c8 = arith.constant 8 : index
    %c0_17 = arith.constant 0 : index
    %31 = vector.load %arg7[%c8, %c0_17] : memref<128x256xf32, #tpu.memory_space<vmem>>, vector<8x256xf32>
    %c0_18 = arith.constant 0 : index
    %c0_19 = arith.constant 0 : index
    %32 = vector.load %arg2[%c0_18, %c0_19] : memref<64x256xf32, #tpu.memory_space<vmem>>, vector<64x256xf32>
    %cst_20 = arith.constant dense<0.000000e+00> : vector<8x256xf32>
    %33 = tpu.matmul %30, %32, %cst_20 {dimension_numbers = #tpu.dot_dimension_numbers<[1], [0], [0], [1], [0, 0, 1, 1], [], []>} : vector<8x64xf32>, vector<64x256xf32>, vector<8x256xf32> -> vector<8x256xf32>
    %34 = arith.addf %31, %33 : vector<8x256xf32>
    %35 = arith.negf %34 : vector<8x256xf32>
    %36 = math.exp %35 : vector<8x256xf32>
    %cst_21 = arith.constant 1.000000e+00 : f32
    %37 = vector.broadcast %cst_21 : f32 to vector<8x256xf32>
    %38 = arith.addf %37, %36 : vector<8x256xf32>
    %39 = arith.divf %37, %38 : vector<8x256xf32>
    %40 = vector.extract_strided_slice %39 {offsets = [0, 0], sizes = [8, 64], strides = [1, 1]} : vector<8x256xf32> to vector<8x64xf32>
    %41 = vector.extract_strided_slice %39 {offsets = [0, 64], sizes = [8, 64], strides = [1, 1]} : vector<8x256xf32> to vector<8x64xf32>
    %42 = vector.extract_strided_slice %39 {offsets = [0, 128], sizes = [8, 64], strides = [1, 1]} : vector<8x256xf32> to vector<8x64xf32>
    %cst_22 = arith.constant 2.000000e+00 : f32
    %43 = vector.broadcast %cst_22 : f32 to vector<8x64xf32>
    %44 = arith.mulf %43, %42 : vector<8x64xf32>
    %cst_23 = arith.constant 1.000000e+00 : f32
    %45 = vector.broadcast %cst_23 : f32 to vector<8x64xf32>
    %46 = arith.subf %44, %45 : vector<8x64xf32>
    %47 = vector.extract_strided_slice %39 {offsets = [0, 192], sizes = [8, 64], strides = [1, 1]} : vector<8x256xf32> to vector<8x64xf32>
    %48 = arith.mulf %41, %28 : vector<8x64xf32>
    %49 = arith.mulf %40, %46 : vector<8x64xf32>
    %50 = arith.addf %48, %49 : vector<8x64xf32>
    %51 = math.tanh %50 : vector<8x64xf32>
    %52 = arith.mulf %47, %51 : vector<8x64xf32>
    %c16 = arith.constant 16 : index
    %c0_24 = arith.constant 0 : index
    %53 = vector.load %arg7[%c16, %c0_24] : memref<128x256xf32, #tpu.memory_space<vmem>>, vector<8x256xf32>
    %c0_25 = arith.constant 0 : index
    %c0_26 = arith.constant 0 : index
    %54 = vector.load %arg2[%c0_25, %c0_26] : memref<64x256xf32, #tpu.memory_space<vmem>>, vector<64x256xf32>
    %cst_27 = arith.constant dense<0.000000e+00> : vector<8x256xf32>
    %55 = tpu.matmul %52, %54, %cst_27 {dimension_numbers = #tpu.dot_dimension_numbers<[1], [0], [0], [1], [0, 0, 1, 1], [], []>} : vector<8x64xf32>, vector<64x256xf32>, vector<8x256xf32> -> vector<8x256xf32>
    %56 = arith.addf %53, %55 : vector<8x256xf32>
    %57 = arith.negf %56 : vector<8x256xf32>
    %58 = math.exp %57 : vector<8x256xf32>
    %cst_28 = arith.constant 1.000000e+00 : f32
    %59 = vector.broadcast %cst_28 : f32 to vector<8x256xf32>
    %60 = arith.addf %59, %58 : vector<8x256xf32>
    %61 = arith.divf %59, %60 : vector<8x256xf32>
    %62 = vector.extract_strided_slice %61 {offsets = [0, 0], sizes = [8, 64], strides = [1, 1]} : vector<8x256xf32> to vector<8x64xf32>
    %63 = vector.extract_strided_slice %61 {offsets = [0, 64], sizes = [8, 64], strides = [1, 1]} : vector<8x256xf32> to vector<8x64xf32>
    %64 = vector.extract_strided_slice %61 {offsets = [0, 128], sizes = [8, 64], strides = [1, 1]} : vector<8x256xf32> to vector<8x64xf32>
    %cst_29 = arith.constant 2.000000e+00 : f32
    %65 = vector.broadcast %cst_29 : f32 to vector<8x64xf32>
    %66 = arith.mulf %65, %64 : vector<8x64xf32>
    %cst_30 = arith.constant 1.000000e+00 : f32
    %67 = vector.broadcast %cst_30 : f32 to vector<8x64xf32>
    %68 = arith.subf %66, %67 : vector<8x64xf32>
    %69 = vector.extract_strided_slice %61 {offsets = [0, 192], sizes = [8, 64], strides = [1, 1]} : vector<8x256xf32> to vector<8x64xf32>
    %70 = arith.mulf %63, %50 : vector<8x64xf32>
    %71 = arith.mulf %62, %68 : vector<8x64xf32>
    %72 = arith.addf %70, %71 : vector<8x64xf32>
    %73 = math.tanh %72 : vector<8x64xf32>
    %74 = arith.mulf %69, %73 : vector<8x64xf32>
    %c24 = arith.constant 24 : index
    %c0_31 = arith.constant 0 : index
    %75 = vector.load %arg7[%c24, %c0_31] : memref<128x256xf32, #tpu.memory_space<vmem>>, vector<8x256xf32>
    %c0_32 = arith.constant 0 : index
    %c0_33 = arith.constant 0 : index
    %76 = vector.load %arg2[%c0_32, %c0_33] : memref<64x256xf32, #tpu.memory_space<vmem>>, vector<64x256xf32>
    %cst_34 = arith.constant dense<0.000000e+00> : vector<8x256xf32>
    %77 = tpu.matmul %74, %76, %cst_34 {dimension_numbers = #tpu.dot_dimension_numbers<[1], [0], [0], [1], [0, 0, 1, 1], [], []>} : vector<8x64xf32>, vector<64x256xf32>, vector<8x256xf32> -> vector<8x256xf32>
    %78 = arith.addf %75, %77 : vector<8x256xf32>
    %79 = arith.negf %78 : vector<8x256xf32>
    %80 = math.exp %79 : vector<8x256xf32>
    %cst_35 = arith.constant 1.000000e+00 : f32
    %81 = vector.broadcast %cst_35 : f32 to vector<8x256xf32>
    %82 = arith.addf %81, %80 : vector<8x256xf32>
    %83 = arith.divf %81, %82 : vector<8x256xf32>
    %84 = vector.extract_strided_slice %83 {offsets = [0, 0], sizes = [8, 64], strides = [1, 1]} : vector<8x256xf32> to vector<8x64xf32>
    %85 = vector.extract_strided_slice %83 {offsets = [0, 64], sizes = [8, 64], strides = [1, 1]} : vector<8x256xf32> to vector<8x64xf32>
    %86 = vector.extract_strided_slice %83 {offsets = [0, 128], sizes = [8, 64], strides = [1, 1]} : vector<8x256xf32> to vector<8x64xf32>
    %cst_36 = arith.constant 2.000000e+00 : f32
    %87 = vector.broadcast %cst_36 : f32 to vector<8x64xf32>
    %88 = arith.mulf %87, %86 : vector<8x64xf32>
    %cst_37 = arith.constant 1.000000e+00 : f32
    %89 = vector.broadcast %cst_37 : f32 to vector<8x64xf32>
    %90 = arith.subf %88, %89 : vector<8x64xf32>
    %91 = vector.extract_strided_slice %83 {offsets = [0, 192], sizes = [8, 64], strides = [1, 1]} : vector<8x256xf32> to vector<8x64xf32>
    %92 = arith.mulf %85, %72 : vector<8x64xf32>
    %93 = arith.mulf %84, %90 : vector<8x64xf32>
    %94 = arith.addf %92, %93 : vector<8x64xf32>
    %95 = math.tanh %94 : vector<8x64xf32>
    %96 = arith.mulf %91, %95 : vector<8x64xf32>
    %c32 = arith.constant 32 : index
    %c0_38 = arith.constant 0 : index
    %97 = vector.load %arg7[%c32, %c0_38] : memref<128x256xf32, #tpu.memory_space<vmem>>, vector<8x256xf32>
    %c0_39 = arith.constant 0 : index
    %c0_40 = arith.constant 0 : index
    %98 = vector.load %arg2[%c0_39, %c0_40] : memref<64x256xf32, #tpu.memory_space<vmem>>, vector<64x256xf32>
    %cst_41 = arith.constant dense<0.000000e+00> : vector<8x256xf32>
    %99 = tpu.matmul %96, %98, %cst_41 {dimension_numbers = #tpu.dot_dimension_numbers<[1], [0], [0], [1], [0, 0, 1, 1], [], []>} : vector<8x64xf32>, vector<64x256xf32>, vector<8x256xf32> -> vector<8x256xf32>
    %100 = arith.addf %97, %99 : vector<8x256xf32>
    %101 = arith.negf %100 : vector<8x256xf32>
    %102 = math.exp %101 : vector<8x256xf32>
    %cst_42 = arith.constant 1.000000e+00 : f32
    %103 = vector.broadcast %cst_42 : f32 to vector<8x256xf32>
    %104 = arith.addf %103, %102 : vector<8x256xf32>
    %105 = arith.divf %103, %104 : vector<8x256xf32>
    %106 = vector.extract_strided_slice %105 {offsets = [0, 0], sizes = [8, 64], strides = [1, 1]} : vector<8x256xf32> to vector<8x64xf32>
    %107 = vector.extract_strided_slice %105 {offsets = [0, 64], sizes = [8, 64], strides = [1, 1]} : vector<8x256xf32> to vector<8x64xf32>
    %108 = vector.extract_strided_slice %105 {offsets = [0, 128], sizes = [8, 64], strides = [1, 1]} : vector<8x256xf32> to vector<8x64xf32>
    %cst_43 = arith.constant 2.000000e+00 : f32
    %109 = vector.broadcast %cst_43 : f32 to vector<8x64xf32>
    %110 = arith.mulf %109, %108 : vector<8x64xf32>
    %cst_44 = arith.constant 1.000000e+00 : f32
    %111 = vector.broadcast %cst_44 : f32 to vector<8x64xf32>
    %112 = arith.subf %110, %111 : vector<8x64xf32>
    %113 = vector.extract_strided_slice %105 {offsets = [0, 192], sizes = [8, 64], strides = [1, 1]} : vector<8x256xf32> to vector<8x64xf32>
    %114 = arith.mulf %107, %94 : vector<8x64xf32>
    %115 = arith.mulf %106, %112 : vector<8x64xf32>
    %116 = arith.addf %114, %115 : vector<8x64xf32>
    %117 = math.tanh %116 : vector<8x64xf32>
    %118 = arith.mulf %113, %117 : vector<8x64xf32>
    %c40 = arith.constant 40 : index
    %c0_45 = arith.constant 0 : index
    %119 = vector.load %arg7[%c40, %c0_45] : memref<128x256xf32, #tpu.memory_space<vmem>>, vector<8x256xf32>
    %c0_46 = arith.constant 0 : index
    %c0_47 = arith.constant 0 : index
    %120 = vector.load %arg2[%c0_46, %c0_47] : memref<64x256xf32, #tpu.memory_space<vmem>>, vector<64x256xf32>
    %cst_48 = arith.constant dense<0.000000e+00> : vector<8x256xf32>
    %121 = tpu.matmul %118, %120, %cst_48 {dimension_numbers = #tpu.dot_dimension_numbers<[1], [0], [0], [1], [0, 0, 1, 1], [], []>} : vector<8x64xf32>, vector<64x256xf32>, vector<8x256xf32> -> vector<8x256xf32>
    %122 = arith.addf %119, %121 : vector<8x256xf32>
    %123 = arith.negf %122 : vector<8x256xf32>
    %124 = math.exp %123 : vector<8x256xf32>
    %cst_49 = arith.constant 1.000000e+00 : f32
    %125 = vector.broadcast %cst_49 : f32 to vector<8x256xf32>
    %126 = arith.addf %125, %124 : vector<8x256xf32>
    %127 = arith.divf %125, %126 : vector<8x256xf32>
    %128 = vector.extract_strided_slice %127 {offsets = [0, 0], sizes = [8, 64], strides = [1, 1]} : vector<8x256xf32> to vector<8x64xf32>
    %129 = vector.extract_strided_slice %127 {offsets = [0, 64], sizes = [8, 64], strides = [1, 1]} : vector<8x256xf32> to vector<8x64xf32>
    %130 = vector.extract_strided_slice %127 {offsets = [0, 128], sizes = [8, 64], strides = [1, 1]} : vector<8x256xf32> to vector<8x64xf32>
    %cst_50 = arith.constant 2.000000e+00 : f32
    %131 = vector.broadcast %cst_50 : f32 to vector<8x64xf32>
    %132 = arith.mulf %131, %130 : vector<8x64xf32>
    %cst_51 = arith.constant 1.000000e+00 : f32
    %133 = vector.broadcast %cst_51 : f32 to vector<8x64xf32>
    %134 = arith.subf %132, %133 : vector<8x64xf32>
    %135 = vector.extract_strided_slice %127 {offsets = [0, 192], sizes = [8, 64], strides = [1, 1]} : vector<8x256xf32> to vector<8x64xf32>
    %136 = arith.mulf %129, %116 : vector<8x64xf32>
    %137 = arith.mulf %128, %134 : vector<8x64xf32>
    %138 = arith.addf %136, %137 : vector<8x64xf32>
    %139 = math.tanh %138 : vector<8x64xf32>
    %140 = arith.mulf %135, %139 : vector<8x64xf32>
    %c48 = arith.constant 48 : index
    %c0_52 = arith.constant 0 : index
    %141 = vector.load %arg7[%c48, %c0_52] : memref<128x256xf32, #tpu.memory_space<vmem>>, vector<8x256xf32>
    %c0_53 = arith.constant 0 : index
    %c0_54 = arith.constant 0 : index
    %142 = vector.load %arg2[%c0_53, %c0_54] : memref<64x256xf32, #tpu.memory_space<vmem>>, vector<64x256xf32>
    %cst_55 = arith.constant dense<0.000000e+00> : vector<8x256xf32>
    %143 = tpu.matmul %140, %142, %cst_55 {dimension_numbers = #tpu.dot_dimension_numbers<[1], [0], [0], [1], [0, 0, 1, 1], [], []>} : vector<8x64xf32>, vector<64x256xf32>, vector<8x256xf32> -> vector<8x256xf32>
    %144 = arith.addf %141, %143 : vector<8x256xf32>
    %145 = arith.negf %144 : vector<8x256xf32>
    %146 = math.exp %145 : vector<8x256xf32>
    %cst_56 = arith.constant 1.000000e+00 : f32
    %147 = vector.broadcast %cst_56 : f32 to vector<8x256xf32>
    %148 = arith.addf %147, %146 : vector<8x256xf32>
    %149 = arith.divf %147, %148 : vector<8x256xf32>
    %150 = vector.extract_strided_slice %149 {offsets = [0, 0], sizes = [8, 64], strides = [1, 1]} : vector<8x256xf32> to vector<8x64xf32>
    %151 = vector.extract_strided_slice %149 {offsets = [0, 64], sizes = [8, 64], strides = [1, 1]} : vector<8x256xf32> to vector<8x64xf32>
    %152 = vector.extract_strided_slice %149 {offsets = [0, 128], sizes = [8, 64], strides = [1, 1]} : vector<8x256xf32> to vector<8x64xf32>
    %cst_57 = arith.constant 2.000000e+00 : f32
    %153 = vector.broadcast %cst_57 : f32 to vector<8x64xf32>
    %154 = arith.mulf %153, %152 : vector<8x64xf32>
    %cst_58 = arith.constant 1.000000e+00 : f32
    %155 = vector.broadcast %cst_58 : f32 to vector<8x64xf32>
    %156 = arith.subf %154, %155 : vector<8x64xf32>
    %157 = vector.extract_strided_slice %149 {offsets = [0, 192], sizes = [8, 64], strides = [1, 1]} : vector<8x256xf32> to vector<8x64xf32>
    %158 = arith.mulf %151, %138 : vector<8x64xf32>
    %159 = arith.mulf %150, %156 : vector<8x64xf32>
    %160 = arith.addf %158, %159 : vector<8x64xf32>
    %161 = math.tanh %160 : vector<8x64xf32>
    %162 = arith.mulf %157, %161 : vector<8x64xf32>
    %c56 = arith.constant 56 : index
    %c0_59 = arith.constant 0 : index
    %163 = vector.load %arg7[%c56, %c0_59] : memref<128x256xf32, #tpu.memory_space<vmem>>, vector<8x256xf32>
    %c0_60 = arith.constant 0 : index
    %c0_61 = arith.constant 0 : index
    %164 = vector.load %arg2[%c0_60, %c0_61] : memref<64x256xf32, #tpu.memory_space<vmem>>, vector<64x256xf32>
    %cst_62 = arith.constant dense<0.000000e+00> : vector<8x256xf32>
    %165 = tpu.matmul %162, %164, %cst_62 {dimension_numbers = #tpu.dot_dimension_numbers<[1], [0], [0], [1], [0, 0, 1, 1], [], []>} : vector<8x64xf32>, vector<64x256xf32>, vector<8x256xf32> -> vector<8x256xf32>
    %166 = arith.addf %163, %165 : vector<8x256xf32>
    %167 = arith.negf %166 : vector<8x256xf32>
    %168 = math.exp %167 : vector<8x256xf32>
    %cst_63 = arith.constant 1.000000e+00 : f32
    %169 = vector.broadcast %cst_63 : f32 to vector<8x256xf32>
    %170 = arith.addf %169, %168 : vector<8x256xf32>
    %171 = arith.divf %169, %170 : vector<8x256xf32>
    %172 = vector.extract_strided_slice %171 {offsets = [0, 0], sizes = [8, 64], strides = [1, 1]} : vector<8x256xf32> to vector<8x64xf32>
    %173 = vector.extract_strided_slice %171 {offsets = [0, 64], sizes = [8, 64], strides = [1, 1]} : vector<8x256xf32> to vector<8x64xf32>
    %174 = vector.extract_strided_slice %171 {offsets = [0, 128], sizes = [8, 64], strides = [1, 1]} : vector<8x256xf32> to vector<8x64xf32>
    %cst_64 = arith.constant 2.000000e+00 : f32
    %175 = vector.broadcast %cst_64 : f32 to vector<8x64xf32>
    %176 = arith.mulf %175, %174 : vector<8x64xf32>
    %cst_65 = arith.constant 1.000000e+00 : f32
    %177 = vector.broadcast %cst_65 : f32 to vector<8x64xf32>
    %178 = arith.subf %176, %177 : vector<8x64xf32>
    %179 = vector.extract_strided_slice %171 {offsets = [0, 192], sizes = [8, 64], strides = [1, 1]} : vector<8x256xf32> to vector<8x64xf32>
    %180 = arith.mulf %173, %160 : vector<8x64xf32>
    %181 = arith.mulf %172, %178 : vector<8x64xf32>
    %182 = arith.addf %180, %181 : vector<8x64xf32>
    %183 = math.tanh %182 : vector<8x64xf32>
    %184 = arith.mulf %179, %183 : vector<8x64xf32>
    %c64 = arith.constant 64 : index
    %c0_66 = arith.constant 0 : index
    %185 = vector.load %arg7[%c64, %c0_66] : memref<128x256xf32, #tpu.memory_space<vmem>>, vector<8x256xf32>
    %c0_67 = arith.constant 0 : index
    %c0_68 = arith.constant 0 : index
    %186 = vector.load %arg2[%c0_67, %c0_68] : memref<64x256xf32, #tpu.memory_space<vmem>>, vector<64x256xf32>
    %cst_69 = arith.constant dense<0.000000e+00> : vector<8x256xf32>
    %187 = tpu.matmul %184, %186, %cst_69 {dimension_numbers = #tpu.dot_dimension_numbers<[1], [0], [0], [1], [0, 0, 1, 1], [], []>} : vector<8x64xf32>, vector<64x256xf32>, vector<8x256xf32> -> vector<8x256xf32>
    %188 = arith.addf %185, %187 : vector<8x256xf32>
    %189 = arith.negf %188 : vector<8x256xf32>
    %190 = math.exp %189 : vector<8x256xf32>
    %cst_70 = arith.constant 1.000000e+00 : f32
    %191 = vector.broadcast %cst_70 : f32 to vector<8x256xf32>
    %192 = arith.addf %191, %190 : vector<8x256xf32>
    %193 = arith.divf %191, %192 : vector<8x256xf32>
    %194 = vector.extract_strided_slice %193 {offsets = [0, 0], sizes = [8, 64], strides = [1, 1]} : vector<8x256xf32> to vector<8x64xf32>
    %195 = vector.extract_strided_slice %193 {offsets = [0, 64], sizes = [8, 64], strides = [1, 1]} : vector<8x256xf32> to vector<8x64xf32>
    %196 = vector.extract_strided_slice %193 {offsets = [0, 128], sizes = [8, 64], strides = [1, 1]} : vector<8x256xf32> to vector<8x64xf32>
    %cst_71 = arith.constant 2.000000e+00 : f32
    %197 = vector.broadcast %cst_71 : f32 to vector<8x64xf32>
    %198 = arith.mulf %197, %196 : vector<8x64xf32>
    %cst_72 = arith.constant 1.000000e+00 : f32
    %199 = vector.broadcast %cst_72 : f32 to vector<8x64xf32>
    %200 = arith.subf %198, %199 : vector<8x64xf32>
    %201 = vector.extract_strided_slice %193 {offsets = [0, 192], sizes = [8, 64], strides = [1, 1]} : vector<8x256xf32> to vector<8x64xf32>
    %202 = arith.mulf %195, %182 : vector<8x64xf32>
    %203 = arith.mulf %194, %200 : vector<8x64xf32>
    %204 = arith.addf %202, %203 : vector<8x64xf32>
    %205 = math.tanh %204 : vector<8x64xf32>
    %206 = arith.mulf %201, %205 : vector<8x64xf32>
    %c72 = arith.constant 72 : index
    %c0_73 = arith.constant 0 : index
    %207 = vector.load %arg7[%c72, %c0_73] : memref<128x256xf32, #tpu.memory_space<vmem>>, vector<8x256xf32>
    %c0_74 = arith.constant 0 : index
    %c0_75 = arith.constant 0 : index
    %208 = vector.load %arg2[%c0_74, %c0_75] : memref<64x256xf32, #tpu.memory_space<vmem>>, vector<64x256xf32>
    %cst_76 = arith.constant dense<0.000000e+00> : vector<8x256xf32>
    %209 = tpu.matmul %206, %208, %cst_76 {dimension_numbers = #tpu.dot_dimension_numbers<[1], [0], [0], [1], [0, 0, 1, 1], [], []>} : vector<8x64xf32>, vector<64x256xf32>, vector<8x256xf32> -> vector<8x256xf32>
    %210 = arith.addf %207, %209 : vector<8x256xf32>
    %211 = arith.negf %210 : vector<8x256xf32>
    %212 = math.exp %211 : vector<8x256xf32>
    %cst_77 = arith.constant 1.000000e+00 : f32
    %213 = vector.broadcast %cst_77 : f32 to vector<8x256xf32>
    %214 = arith.addf %213, %212 : vector<8x256xf32>
    %215 = arith.divf %213, %214 : vector<8x256xf32>
    %216 = vector.extract_strided_slice %215 {offsets = [0, 0], sizes = [8, 64], strides = [1, 1]} : vector<8x256xf32> to vector<8x64xf32>
    %217 = vector.extract_strided_slice %215 {offsets = [0, 64], sizes = [8, 64], strides = [1, 1]} : vector<8x256xf32> to vector<8x64xf32>
    %218 = vector.extract_strided_slice %215 {offsets = [0, 128], sizes = [8, 64], strides = [1, 1]} : vector<8x256xf32> to vector<8x64xf32>
    %cst_78 = arith.constant 2.000000e+00 : f32
    %219 = vector.broadcast %cst_78 : f32 to vector<8x64xf32>
    %220 = arith.mulf %219, %218 : vector<8x64xf32>
    %cst_79 = arith.constant 1.000000e+00 : f32
    %221 = vector.broadcast %cst_79 : f32 to vector<8x64xf32>
    %222 = arith.subf %220, %221 : vector<8x64xf32>
    %223 = vector.extract_strided_slice %215 {offsets = [0, 192], sizes = [8, 64], strides = [1, 1]} : vector<8x256xf32> to vector<8x64xf32>
    %224 = arith.mulf %217, %204 : vector<8x64xf32>
    %225 = arith.mulf %216, %222 : vector<8x64xf32>
    %226 = arith.addf %224, %225 : vector<8x64xf32>
    %227 = math.tanh %226 : vector<8x64xf32>
    %228 = arith.mulf %223, %227 : vector<8x64xf32>
    %c0_80 = arith.constant 0 : index
    %c0_81 = arith.constant 0 : index
    %229 = vector.load %arg8[%c0_80, %c0_81] : memref<56x64xf32, #tpu.memory_space<vmem>>, vector<8x64xf32>
    tpu.vector_store %arg8[%c0_80, %c0_81], %228 {strides = array<i32>} : memref<56x64xf32, #tpu.memory_space<vmem>>, vector<8x64xf32>,
    %c80 = arith.constant 80 : index
    %c0_82 = arith.constant 0 : index
    %230 = vector.load %arg7[%c80, %c0_82] : memref<128x256xf32, #tpu.memory_space<vmem>>, vector<8x256xf32>
    %c0_83 = arith.constant 0 : index
    %c0_84 = arith.constant 0 : index
    %231 = vector.load %arg2[%c0_83, %c0_84] : memref<64x256xf32, #tpu.memory_space<vmem>>, vector<64x256xf32>
    %cst_85 = arith.constant dense<0.000000e+00> : vector<8x256xf32>
    %232 = tpu.matmul %228, %231, %cst_85 {dimension_numbers = #tpu.dot_dimension_numbers<[1], [0], [0], [1], [0, 0, 1, 1], [], []>} : vector<8x64xf32>, vector<64x256xf32>, vector<8x256xf32> -> vector<8x256xf32>
    %233 = arith.addf %230, %232 : vector<8x256xf32>
    %234 = arith.negf %233 : vector<8x256xf32>
    %235 = math.exp %234 : vector<8x256xf32>
    %cst_86 = arith.constant 1.000000e+00 : f32
    %236 = vector.broadcast %cst_86 : f32 to vector<8x256xf32>
    %237 = arith.addf %236, %235 : vector<8x256xf32>
    %238 = arith.divf %236, %237 : vector<8x256xf32>
    %239 = vector.extract_strided_slice %238 {offsets = [0, 0], sizes = [8, 64], strides = [1, 1]} : vector<8x256xf32> to vector<8x64xf32>
    %240 = vector.extract_strided_slice %238 {offsets = [0, 64], sizes = [8, 64], strides = [1, 1]} : vector<8x256xf32> to vector<8x64xf32>
    %241 = vector.extract_strided_slice %238 {offsets = [0, 128], sizes = [8, 64], strides = [1, 1]} : vector<8x256xf32> to vector<8x64xf32>
    %cst_87 = arith.constant 2.000000e+00 : f32
    %242 = vector.broadcast %cst_87 : f32 to vector<8x64xf32>
    %243 = arith.mulf %242, %241 : vector<8x64xf32>
    %cst_88 = arith.constant 1.000000e+00 : f32
    %244 = vector.broadcast %cst_88 : f32 to vector<8x64xf32>
    %245 = arith.subf %243, %244 : vector<8x64xf32>
    %246 = vector.extract_strided_slice %238 {offsets = [0, 192], sizes = [8, 64], strides = [1, 1]} : vector<8x256xf32> to vector<8x64xf32>
    %247 = arith.mulf %240, %226 : vector<8x64xf32>
    %248 = arith.mulf %239, %245 : vector<8x64xf32>
    %249 = arith.addf %247, %248 : vector<8x64xf32>
    %250 = math.tanh %249 : vector<8x64xf32>
    %251 = arith.mulf %246, %250 : vector<8x64xf32>
    %c8_89 = arith.constant 8 : index
    %c0_90 = arith.constant 0 : index
    %252 = vector.load %arg8[%c8_89, %c0_90] : memref<56x64xf32, #tpu.memory_space<vmem>>, vector<8x64xf32>
    tpu.vector_store %arg8[%c8_89, %c0_90], %251 {strides = array<i32>} : memref<56x64xf32, #tpu.memory_space<vmem>>, vector<8x64xf32>,
    %c88 = arith.constant 88 : index
    %c0_91 = arith.constant 0 : index
    %253 = vector.load %arg7[%c88, %c0_91] : memref<128x256xf32, #tpu.memory_space<vmem>>, vector<8x256xf32>
    %c0_92 = arith.constant 0 : index
    %c0_93 = arith.constant 0 : index
    %254 = vector.load %arg2[%c0_92, %c0_93] : memref<64x256xf32, #tpu.memory_space<vmem>>, vector<64x256xf32>
    %cst_94 = arith.constant dense<0.000000e+00> : vector<8x256xf32>
    %255 = tpu.matmul %251, %254, %cst_94 {dimension_numbers = #tpu.dot_dimension_numbers<[1], [0], [0], [1], [0, 0, 1, 1], [], []>} : vector<8x64xf32>, vector<64x256xf32>, vector<8x256xf32> -> vector<8x256xf32>
    %256 = arith.addf %253, %255 : vector<8x256xf32>
    %257 = arith.negf %256 : vector<8x256xf32>
    %258 = math.exp %257 : vector<8x256xf32>
    %cst_95 = arith.constant 1.000000e+00 : f32
    %259 = vector.broadcast %cst_95 : f32 to vector<8x256xf32>
    %260 = arith.addf %259, %258 : vector<8x256xf32>
    %261 = arith.divf %259, %260 : vector<8x256xf32>
    %262 = vector.extract_strided_slice %261 {offsets = [0, 0], sizes = [8, 64], strides = [1, 1]} : vector<8x256xf32> to vector<8x64xf32>
    %263 = vector.extract_strided_slice %261 {offsets = [0, 64], sizes = [8, 64], strides = [1, 1]} : vector<8x256xf32> to vector<8x64xf32>
    %264 = vector.extract_strided_slice %261 {offsets = [0, 128], sizes = [8, 64], strides = [1, 1]} : vector<8x256xf32> to vector<8x64xf32>
    %cst_96 = arith.constant 2.000000e+00 : f32
    %265 = vector.broadcast %cst_96 : f32 to vector<8x64xf32>
    %266 = arith.mulf %265, %264 : vector<8x64xf32>
    %cst_97 = arith.constant 1.000000e+00 : f32
    %267 = vector.broadcast %cst_97 : f32 to vector<8x64xf32>
    %268 = arith.subf %266, %267 : vector<8x64xf32>
    %269 = vector.extract_strided_slice %261 {offsets = [0, 192], sizes = [8, 64], strides = [1, 1]} : vector<8x256xf32> to vector<8x64xf32>
    %270 = arith.mulf %263, %249 : vector<8x64xf32>
    %271 = arith.mulf %262, %268 : vector<8x64xf32>
    %272 = arith.addf %270, %271 : vector<8x64xf32>
    %273 = math.tanh %272 : vector<8x64xf32>
    %274 = arith.mulf %269, %273 : vector<8x64xf32>
    %c16_98 = arith.constant 16 : index
    %c0_99 = arith.constant 0 : index
    %275 = vector.load %arg8[%c16_98, %c0_99] : memref<56x64xf32, #tpu.memory_space<vmem>>, vector<8x64xf32>
    tpu.vector_store %arg8[%c16_98, %c0_99], %274 {strides = array<i32>} : memref<56x64xf32, #tpu.memory_space<vmem>>, vector<8x64xf32>,
    %c96 = arith.constant 96 : index
    %c0_100 = arith.constant 0 : index
    %276 = vector.load %arg7[%c96, %c0_100] : memref<128x256xf32, #tpu.memory_space<vmem>>, vector<8x256xf32>
    %c0_101 = arith.constant 0 : index
    %c0_102 = arith.constant 0 : index
    %277 = vector.load %arg2[%c0_101, %c0_102] : memref<64x256xf32, #tpu.memory_space<vmem>>, vector<64x256xf32>
    %cst_103 = arith.constant dense<0.000000e+00> : vector<8x256xf32>
    %278 = tpu.matmul %274, %277, %cst_103 {dimension_numbers = #tpu.dot_dimension_numbers<[1], [0], [0], [1], [0, 0, 1, 1], [], []>} : vector<8x64xf32>, vector<64x256xf32>, vector<8x256xf32> -> vector<8x256xf32>
    %279 = arith.addf %276, %278 : vector<8x256xf32>
    %280 = arith.negf %279 : vector<8x256xf32>
    %281 = math.exp %280 : vector<8x256xf32>
    %cst_104 = arith.constant 1.000000e+00 : f32
    %282 = vector.broadcast %cst_104 : f32 to vector<8x256xf32>
    %283 = arith.addf %282, %281 : vector<8x256xf32>
    %284 = arith.divf %282, %283 : vector<8x256xf32>
    %285 = vector.extract_strided_slice %284 {offsets = [0, 0], sizes = [8, 64], strides = [1, 1]} : vector<8x256xf32> to vector<8x64xf32>
    %286 = vector.extract_strided_slice %284 {offsets = [0, 64], sizes = [8, 64], strides = [1, 1]} : vector<8x256xf32> to vector<8x64xf32>
    %287 = vector.extract_strided_slice %284 {offsets = [0, 128], sizes = [8, 64], strides = [1, 1]} : vector<8x256xf32> to vector<8x64xf32>
    %cst_105 = arith.constant 2.000000e+00 : f32
    %288 = vector.broadcast %cst_105 : f32 to vector<8x64xf32>
    %289 = arith.mulf %288, %287 : vector<8x64xf32>
    %cst_106 = arith.constant 1.000000e+00 : f32
    %290 = vector.broadcast %cst_106 : f32 to vector<8x64xf32>
    %291 = arith.subf %289, %290 : vector<8x64xf32>
    %292 = vector.extract_strided_slice %284 {offsets = [0, 192], sizes = [8, 64], strides = [1, 1]} : vector<8x256xf32> to vector<8x64xf32>
    %293 = arith.mulf %286, %272 : vector<8x64xf32>
    %294 = arith.mulf %285, %291 : vector<8x64xf32>
    %295 = arith.addf %293, %294 : vector<8x64xf32>
    %296 = math.tanh %295 : vector<8x64xf32>
    %297 = arith.mulf %292, %296 : vector<8x64xf32>
    %c24_107 = arith.constant 24 : index
    %c0_108 = arith.constant 0 : index
    %298 = vector.load %arg8[%c24_107, %c0_108] : memref<56x64xf32, #tpu.memory_space<vmem>>, vector<8x64xf32>
    tpu.vector_store %arg8[%c24_107, %c0_108], %297 {strides = array<i32>} : memref<56x64xf32, #tpu.memory_space<vmem>>, vector<8x64xf32>,
    %c104 = arith.constant 104 : index
    %c0_109 = arith.constant 0 : index
    %299 = vector.load %arg7[%c104, %c0_109] : memref<128x256xf32, #tpu.memory_space<vmem>>, vector<8x256xf32>
    %c0_110 = arith.constant 0 : index
    %c0_111 = arith.constant 0 : index
    %300 = vector.load %arg2[%c0_110, %c0_111] : memref<64x256xf32, #tpu.memory_space<vmem>>, vector<64x256xf32>
    %cst_112 = arith.constant dense<0.000000e+00> : vector<8x256xf32>
    %301 = tpu.matmul %297, %300, %cst_112 {dimension_numbers = #tpu.dot_dimension_numbers<[1], [0], [0], [1], [0, 0, 1, 1], [], []>} : vector<8x64xf32>, vector<64x256xf32>, vector<8x256xf32> -> vector<8x256xf32>
    %302 = arith.addf %299, %301 : vector<8x256xf32>
    %303 = arith.negf %302 : vector<8x256xf32>
    %304 = math.exp %303 : vector<8x256xf32>
    %cst_113 = arith.constant 1.000000e+00 : f32
    %305 = vector.broadcast %cst_113 : f32 to vector<8x256xf32>
    %306 = arith.addf %305, %304 : vector<8x256xf32>
    %307 = arith.divf %305, %306 : vector<8x256xf32>
    %308 = vector.extract_strided_slice %307 {offsets = [0, 0], sizes = [8, 64], strides = [1, 1]} : vector<8x256xf32> to vector<8x64xf32>
    %309 = vector.extract_strided_slice %307 {offsets = [0, 64], sizes = [8, 64], strides = [1, 1]} : vector<8x256xf32> to vector<8x64xf32>
    %310 = vector.extract_strided_slice %307 {offsets = [0, 128], sizes = [8, 64], strides = [1, 1]} : vector<8x256xf32> to vector<8x64xf32>
    %cst_114 = arith.constant 2.000000e+00 : f32
    %311 = vector.broadcast %cst_114 : f32 to vector<8x64xf32>
    %312 = arith.mulf %311, %310 : vector<8x64xf32>
    %cst_115 = arith.constant 1.000000e+00 : f32
    %313 = vector.broadcast %cst_115 : f32 to vector<8x64xf32>
    %314 = arith.subf %312, %313 : vector<8x64xf32>
    %315 = vector.extract_strided_slice %307 {offsets = [0, 192], sizes = [8, 64], strides = [1, 1]} : vector<8x256xf32> to vector<8x64xf32>
    %316 = arith.mulf %309, %295 : vector<8x64xf32>
    %317 = arith.mulf %308, %314 : vector<8x64xf32>
    %318 = arith.addf %316, %317 : vector<8x64xf32>
    %319 = math.tanh %318 : vector<8x64xf32>
    %320 = arith.mulf %315, %319 : vector<8x64xf32>
    %c32_116 = arith.constant 32 : index
    %c0_117 = arith.constant 0 : index
    %321 = vector.load %arg8[%c32_116, %c0_117] : memref<56x64xf32, #tpu.memory_space<vmem>>, vector<8x64xf32>
    tpu.vector_store %arg8[%c32_116, %c0_117], %320 {strides = array<i32>} : memref<56x64xf32, #tpu.memory_space<vmem>>, vector<8x64xf32>,
    %c112 = arith.constant 112 : index
    %c0_118 = arith.constant 0 : index
    %322 = vector.load %arg7[%c112, %c0_118] : memref<128x256xf32, #tpu.memory_space<vmem>>, vector<8x256xf32>
    %c0_119 = arith.constant 0 : index
    %c0_120 = arith.constant 0 : index
    %323 = vector.load %arg2[%c0_119, %c0_120] : memref<64x256xf32, #tpu.memory_space<vmem>>, vector<64x256xf32>
    %cst_121 = arith.constant dense<0.000000e+00> : vector<8x256xf32>
    %324 = tpu.matmul %320, %323, %cst_121 {dimension_numbers = #tpu.dot_dimension_numbers<[1], [0], [0], [1], [0, 0, 1, 1], [], []>} : vector<8x64xf32>, vector<64x256xf32>, vector<8x256xf32> -> vector<8x256xf32>
    %325 = arith.addf %322, %324 : vector<8x256xf32>
    %326 = arith.negf %325 : vector<8x256xf32>
    %327 = math.exp %326 : vector<8x256xf32>
    %cst_122 = arith.constant 1.000000e+00 : f32
    %328 = vector.broadcast %cst_122 : f32 to vector<8x256xf32>
    %329 = arith.addf %328, %327 : vector<8x256xf32>
    %330 = arith.divf %328, %329 : vector<8x256xf32>
    %331 = vector.extract_strided_slice %330 {offsets = [0, 0], sizes = [8, 64], strides = [1, 1]} : vector<8x256xf32> to vector<8x64xf32>
    %332 = vector.extract_strided_slice %330 {offsets = [0, 64], sizes = [8, 64], strides = [1, 1]} : vector<8x256xf32> to vector<8x64xf32>
    %333 = vector.extract_strided_slice %330 {offsets = [0, 128], sizes = [8, 64], strides = [1, 1]} : vector<8x256xf32> to vector<8x64xf32>
    %cst_123 = arith.constant 2.000000e+00 : f32
    %334 = vector.broadcast %cst_123 : f32 to vector<8x64xf32>
    %335 = arith.mulf %334, %333 : vector<8x64xf32>
    %cst_124 = arith.constant 1.000000e+00 : f32
    %336 = vector.broadcast %cst_124 : f32 to vector<8x64xf32>
    %337 = arith.subf %335, %336 : vector<8x64xf32>
    %338 = vector.extract_strided_slice %330 {offsets = [0, 192], sizes = [8, 64], strides = [1, 1]} : vector<8x256xf32> to vector<8x64xf32>
    %339 = arith.mulf %332, %318 : vector<8x64xf32>
    %340 = arith.mulf %331, %337 : vector<8x64xf32>
    %341 = arith.addf %339, %340 : vector<8x64xf32>
    %342 = math.tanh %341 : vector<8x64xf32>
    %343 = arith.mulf %338, %342 : vector<8x64xf32>
    %c40_125 = arith.constant 40 : index
    %c0_126 = arith.constant 0 : index
    %344 = vector.load %arg8[%c40_125, %c0_126] : memref<56x64xf32, #tpu.memory_space<vmem>>, vector<8x64xf32>
    tpu.vector_store %arg8[%c40_125, %c0_126], %343 {strides = array<i32>} : memref<56x64xf32, #tpu.memory_space<vmem>>, vector<8x64xf32>,
    %c120 = arith.constant 120 : index
    %c0_127 = arith.constant 0 : index
    %345 = vector.load %arg7[%c120, %c0_127] : memref<128x256xf32, #tpu.memory_space<vmem>>, vector<8x256xf32>
    %c0_128 = arith.constant 0 : index
    %c0_129 = arith.constant 0 : index
    %346 = vector.load %arg2[%c0_128, %c0_129] : memref<64x256xf32, #tpu.memory_space<vmem>>, vector<64x256xf32>
    %cst_130 = arith.constant dense<0.000000e+00> : vector<8x256xf32>
    %347 = tpu.matmul %343, %346, %cst_130 {dimension_numbers = #tpu.dot_dimension_numbers<[1], [0], [0], [1], [0, 0, 1, 1], [], []>} : vector<8x64xf32>, vector<64x256xf32>, vector<8x256xf32> -> vector<8x256xf32>
    %348 = arith.addf %345, %347 : vector<8x256xf32>
    %349 = arith.negf %348 : vector<8x256xf32>
    %350 = math.exp %349 : vector<8x256xf32>
    %cst_131 = arith.constant 1.000000e+00 : f32
    %351 = vector.broadcast %cst_131 : f32 to vector<8x256xf32>
    %352 = arith.addf %351, %350 : vector<8x256xf32>
    %353 = arith.divf %351, %352 : vector<8x256xf32>
    %354 = vector.extract_strided_slice %353 {offsets = [0, 0], sizes = [8, 64], strides = [1, 1]} : vector<8x256xf32> to vector<8x64xf32>
    %355 = vector.extract_strided_slice %353 {offsets = [0, 64], sizes = [8, 64], strides = [1, 1]} : vector<8x256xf32> to vector<8x64xf32>
    %356 = vector.extract_strided_slice %353 {offsets = [0, 128], sizes = [8, 64], strides = [1, 1]} : vector<8x256xf32> to vector<8x64xf32>
    %cst_132 = arith.constant 2.000000e+00 : f32
    %357 = vector.broadcast %cst_132 : f32 to vector<8x64xf32>
    %358 = arith.mulf %357, %356 : vector<8x64xf32>
    %cst_133 = arith.constant 1.000000e+00 : f32
    %359 = vector.broadcast %cst_133 : f32 to vector<8x64xf32>
    %360 = arith.subf %358, %359 : vector<8x64xf32>
    %361 = vector.extract_strided_slice %353 {offsets = [0, 192], sizes = [8, 64], strides = [1, 1]} : vector<8x256xf32> to vector<8x64xf32>
    %362 = arith.mulf %355, %341 : vector<8x64xf32>
    %363 = arith.mulf %354, %360 : vector<8x64xf32>
    %364 = arith.addf %362, %363 : vector<8x64xf32>
    %365 = math.tanh %364 : vector<8x64xf32>
    %366 = arith.mulf %361, %365 : vector<8x64xf32>
    %c48_134 = arith.constant 48 : index
    %c0_135 = arith.constant 0 : index
    %367 = vector.load %arg8[%c48_134, %c0_135] : memref<56x64xf32, #tpu.memory_space<vmem>>, vector<8x64xf32>
    tpu.vector_store %arg8[%c48_134, %c0_135], %366 {strides = array<i32>} : memref<56x64xf32, #tpu.memory_space<vmem>>, vector<8x64xf32>,
    %c0_136 = arith.constant 0 : index
    %c0_137 = arith.constant 0 : index
    %368 = vector.load %arg8[%c0_136, %c0_137] : memref<56x64xf32, #tpu.memory_space<vmem>>, vector<56x64xf32>
    %c0_138 = arith.constant 0 : index
    %c0_139 = arith.constant 0 : index
    %369 = vector.load %arg4[%c0_138, %c0_139] : memref<64x128xf32, #tpu.memory_space<vmem>>, vector<64x128xf32>
    %cst_140 = arith.constant dense<0.000000e+00> : vector<56x128xf32>
    %370 = tpu.matmul %368, %369, %cst_140 {dimension_numbers = #tpu.dot_dimension_numbers<[1], [0], [0], [1], [0, 0, 1, 1], [], []>} : vector<56x64xf32>, vector<64x128xf32>, vector<56x128xf32> -> vector<56x128xf32>
    %c0_141 = arith.constant 0 : index
    %c0_142 = arith.constant 0 : index
    %371 = memref.load %arg5[%c0_141, %c0_142] : memref<1x1xf32, #tpu.memory_space<smem>>
    %372 = vector.broadcast %371 : f32 to vector<56x128xf32>
    %373 = arith.addf %370, %372 : vector<56x128xf32>
    %c0_143 = arith.constant 0 : index
    %c0_144 = arith.constant 0 : index
    %374 = vector.load %arg6[%c0_143, %c0_144] : memref<56x128xf32, #tpu.memory_space<vmem>>, vector<56x128xf32>
    tpu.vector_store %arg6[%c0_143, %c0_144], %373 {strides = array<i32>} : memref<56x128xf32, #tpu.memory_space<vmem>>, vector<56x128xf32>,
    return
  }
}

</mosaic_0001>

<llo_original>
// kernel: tpu_custom_call.1
$region0: #{tpu_custom_call.1}
  #allocation0 [shape = 'u32[]', space=smem, size = 0x4, offset = 0x4, fixed_abs, tag = 'smem constant byte address 0x4 - core index']
  #allocation1 [shape = 'u32[144,128]{1,0:T(1,128)}', space=vmem, size = 0x12000, scoped, tag = 'internal scratch']
  #allocation2 [shape = 'f32[128,256]{1,0:T(8,128)}', space=vmem, size = 0x20000, scoped, tag = 'scratch operand']
  #allocation3 [shape = 'f32[56,64]{1,0:T(8,128)}', space=vmem, size = 0x7000, scoped, tag = 'scratch operand']
  #allocation4 [shape = 'f32[1,1]{1,0:T(1,128)S(6)}', space=smem, size = 0x200, scoped, tag = 'scoped memory for tpu_custom_call.1']
  %s0 = inlined_call_operand.hbm [shape: f32[128,128], index: 0, kind: input, shape index: {}]
  %s1 = inlined_call_operand.hbm [shape: f32[128,256], index: 1, kind: input, shape index: {}]
  %s2 = inlined_call_operand.hbm [shape: f32[64,256], index: 2, kind: input, shape index: {}]
  %s3 = inlined_call_operand.vmem [shape: f32[1,256], index: 3, kind: input, shape index: {}]
  %s4 = inlined_call_operand.hbm [shape: f32[64,128], index: 4, kind: input, shape index: {}]
  %s5 = inlined_call_operand.<no memory space> [shape: f32[1,1], index: 5, kind: input, shape index: {}]
  %s6 = inlined_call_operand.hbm [shape: f32[56,128], index: 6, kind: output, shape index: {}]
  %s7 = sld [smem:[#allocation0]]
  $region50: #{tpu_custom_call.1} parent=0
    _
  %s9 = ssub.s32 1, %s7
  %s10 = scalar_select 0, %s9, %s7
  %11 = sst [smem:[#allocation4]] %s5
  $region1: #{tpu_custom_call.1} parent=0
    #allocation5 [shape = 'u8[65536]{0}', space=vmem, size = 0x10000, scoped, tag = 'input window, operand 0, single buffered']
    #allocation6 [shape = 's32[1]{0}', space=sflag, size = 0x4, scoped, tag = 'scoped memory for tpu_custom_call.1']
    #allocation7 [shape = 's32[1]{0}', space=sflag, size = 0x4, scoped, tag = 'scoped memory for tpu_custom_call.1']
    #allocation8 [shape = 'u8[131072]{0}', space=vmem, size = 0x20000, scoped, tag = 'input window, operand 1, single buffered']
    #allocation9 [shape = 's32[1]{0}', space=sflag, size = 0x4, scoped, tag = 'scoped memory for tpu_custom_call.1']
    #allocation10 [shape = 'u8[65536]{0}', space=vmem, size = 0x10000, scoped, tag = 'input window, operand 2, single buffered']
    #allocation11 [shape = 'u8[32768]{0}', space=vmem, size = 0x8000, scoped, tag = 'input window, operand 4, single buffered']
    #allocation12 [shape = 's32[1]{0}', space=sflag, size = 0x4, scoped, tag = 'scoped memory for tpu_custom_call.1']
    #allocation13 [shape = 'u8[28672]{0}', space=vmem, size = 0x7000, scoped, tag = 'output window, operand 0, single buffered']
    %12 = vsyncpa [#allocation6], 0
    %13 = vsyncpa [#allocation9], 0
    %14 = vsyncpa [#allocation12], 0
    %15 = vsyncpa [#allocation7], 0
    // Predicated region
    $region2: #{tpu_custom_call.1} parent=1 // pred_check
      _
    $region3: #{tpu_custom_call.1} parent=1 // pred_check_branch
      %17 = sbr.rel (0) target = $region5
    $region4: #{tpu_custom_call.1} parent=1 // pred_region
      %s19 = ssub.s32 2048, 2048
      %20 = vsyncadd [#allocation6], %s19
      %s21 = sshll.u32 [#allocation5], 4
      %s22 = int_to_ptr.vmem [resolvable:$true] %s21
      %27 = dma.hbm_to_vmem [thread:$0]  %s0, 2048, %s22, [#allocation6], 128, 128, 8
    $region5: #{tpu_custom_call.1} parent=1 // pred_fallthru
      _
    // Predicated region
    $region6: #{tpu_custom_call.1} parent=1 // pred_check
      _
    $region7: #{tpu_custom_call.1} parent=1 // pred_check_branch
      %29 = sbr.rel (0) target = $region9
    $region8: #{tpu_custom_call.1} parent=1 // pred_region
      %s31 = ssub.s32 4096, 4096
      %32 = vsyncadd [#allocation9], %s31
      %s33 = sshll.u32 [#allocation8], 4
      %s34 = int_to_ptr.vmem [resolvable:$true] %s33
      %39 = dma.hbm_to_vmem [thread:$0]  %s1, 4096, %s34, [#allocation9], 256, 256, 16
    $region9: #{tpu_custom_call.1} parent=1 // pred_fallthru
      _
    // Predicated region
    $region10: #{tpu_custom_call.1} parent=1 // pred_check
      _
    $region11: #{tpu_custom_call.1} parent=1 // pred_check_branch
      %41 = sbr.rel (0) target = $region13
    $region12: #{tpu_custom_call.1} parent=1 // pred_region
      %s43 = ssub.s32 2048, 2048
      %44 = vsyncadd [#allocation9], %s43
      %s45 = sshll.u32 [#allocation10], 4
      %s46 = int_to_ptr.vmem [resolvable:$true] %s45
      %51 = dma.hbm_to_vmem [thread:$0]  %s2, 2048, %s46, [#allocation9], 256, 256, 16
    $region13: #{tpu_custom_call.1} parent=1 // pred_fallthru
      _
    // Predicated region
    $region14: #{tpu_custom_call.1} parent=1 // pred_check
      _
    $region15: #{tpu_custom_call.1} parent=1 // pred_check_branch
      %53 = sbr.rel (0) target = $region17
    $region16: #{tpu_custom_call.1} parent=1 // pred_region
      _
    $region17: #{tpu_custom_call.1} parent=1 // pred_fallthru
      _
    // Predicated region
    $region18: #{tpu_custom_call.1} parent=1 // pred_check
      _
    $region19: #{tpu_custom_call.1} parent=1 // pred_check_branch
      %55 = sbr.rel (0) target = $region21
    $region20: #{tpu_custom_call.1} parent=1 // pred_region
      %s57 = ssub.s32 1024, 1024
      %58 = vsyncadd [#allocation12], %s57
      %s59 = sshll.u32 [#allocation11], 4
      %s60 = int_to_ptr.vmem [resolvable:$true] %s59
      %65 = dma.hbm_to_vmem [thread:$0]  %s4, 1024, %s60, [#allocation12], 128, 128, 8
    $region21: #{tpu_custom_call.1} parent=1 // pred_fallthru
      _
    // Predicated region
    $region22: #{tpu_custom_call.1} parent=1 // pred_check
      _
    $region23: #{tpu_custom_call.1} parent=1 // pred_check_branch
      %67 = sbr.rel (0) target = $region25
    $region24: #{tpu_custom_call.1} parent=1 // pred_region
      _
    $region25: #{tpu_custom_call.1} parent=1 // pred_fallthru
      _
    // Predicated region
    $region26: #{tpu_custom_call.1} parent=1 // pred_check
      _
    $region27: #{tpu_custom_call.1} parent=1 // pred_check_branch
      %69 = sbr.rel (0) target = $region29
    $region28: #{tpu_custom_call.1} parent=1 // pred_region
      %70 = dma.done [#allocation6], 2048
    $region29: #{tpu_custom_call.1} parent=1 // pred_fallthru
      _
    // Predicated region
    $region30: #{tpu_custom_call.1} parent=1 // pred_check
      _
    $region31: #{tpu_custom_call.1} parent=1 // pred_check_branch
      %72 = sbr.rel (0) target = $region33
    $region32: #{tpu_custom_call.1} parent=1 // pred_region
      %73 = dma.done [#allocation9], 4096
    $region33: #{tpu_custom_call.1} parent=1 // pred_fallthru
      _
    // Predicated region
    $region34: #{tpu_custom_call.1} parent=1 // pred_check
      _
    $region35: #{tpu_custom_call.1} parent=1 // pred_check_branch
      %75 = sbr.rel (0) target = $region37
    $region36: #{tpu_custom_call.1} parent=1 // pred_region
      %76 = dma.done [#allocation9], 2048
    $region37: #{tpu_custom_call.1} parent=1 // pred_fallthru
      _
    // Predicated region
    $region38: #{tpu_custom_call.1} parent=1 // pred_check
      _
    $region39: #{tpu_custom_call.1} parent=1 // pred_check_branch
      %78 = sbr.rel (0) target = $region41
    $region40: #{tpu_custom_call.1} parent=1 // pred_region
      %79 = dma.done [#allocation12], 1024
    $region41: #{tpu_custom_call.1} parent=1 // pred_fallthru
      _
    %v80 = vld [vmem:[#allocation5] sm:$0xff]
    %v81 = vld [vmem:[#allocation5 + $0x8] sm:$0xff]
    %v82 = vld [vmem:[#allocation5 + $0x10] sm:$0xff]
    %v83 = vld [vmem:[#allocation5 + $0x18] sm:$0xff]
    %v84 = vld [vmem:[#allocation5 + $0x20] sm:$0xff]
    %v85 = vld [vmem:[#allocation5 + $0x28] sm:$0xff]
    %v86 = vld [vmem:[#allocation5 + $0x30] sm:$0xff]
    %v87 = vld [vmem:[#allocation5 + $0x38] sm:$0xff]
    %v88 = vld [vmem:[#allocation5 + $0x40] sm:$0xff]
    %v89 = vld [vmem:[#allocation5 + $0x48] sm:$0xff]
    %v90 = vld [vmem:[#allocation5 + $0x50] sm:$0xff]
    %v91 = vld [vmem:[#allocation5 + $0x58] sm:$0xff]
    %v92 = vld [vmem:[#allocation5 + $0x60] sm:$0xff]
    %v93 = vld [vmem:[#allocation5 + $0x68] sm:$0xff]
    %v94 = vld [vmem:[#allocation5 + $0x70] sm:$0xff]
    %v95 = vld [vmem:[#allocation5 + $0x78] sm:$0xff]
    %v96 = vld [vmem:[#allocation8] sm:$0xff]
    %v97 = vld [vmem:[#allocation8 + $0x8] sm:$0xff]
    %v98 = vld [vmem:[#allocation8 + $0x10] sm:$0xff]
    %v99 = vld [vmem:[#allocation8 + $0x18] sm:$0xff]
    %v100 = vld [vmem:[#allocation8 + $0x20] sm:$0xff]
    %v101 = vld [vmem:[#allocation8 + $0x28] sm:$0xff]
    %v102 = vld [vmem:[#allocation8 + $0x30] sm:$0xff]
    %v103 = vld [vmem:[#allocation8 + $0x38] sm:$0xff]
    %v104 = vld [vmem:[#allocation8 + $0x40] sm:$0xff]
    %v105 = vld [vmem:[#allocation8 + $0x48] sm:$0xff]
    %v106 = vld [vmem:[#allocation8 + $0x50] sm:$0xff]
    %v107 = vld [vmem:[#allocation8 + $0x58] sm:$0xff]
    %v108 = vld [vmem:[#allocation8 + $0x60] sm:$0xff]
    %v109 = vld [vmem:[#allocation8 + $0x68] sm:$0xff]
    %v110 = vld [vmem:[#allocation8 + $0x70] sm:$0xff]
    %v111 = vld [vmem:[#allocation8 + $0x78] sm:$0xff]
    %v112 = vld [vmem:[#allocation8 + $0x80] sm:$0xff]
    %v113 = vld [vmem:[#allocation8 + $0x88] sm:$0xff]
    %v114 = vld [vmem:[#allocation8 + $0x90] sm:$0xff]
    %v115 = vld [vmem:[#allocation8 + $0x98] sm:$0xff]
    %v116 = vld [vmem:[#allocation8 + $0xa0] sm:$0xff]
    %v117 = vld [vmem:[#allocation8 + $0xa8] sm:$0xff]
    %v118 = vld [vmem:[#allocation8 + $0xb0] sm:$0xff]
    %v119 = vld [vmem:[#allocation8 + $0xb8] sm:$0xff]
    %v120 = vld [vmem:[#allocation8 + $0xc0] sm:$0xff]
    %v121 = vld [vmem:[#allocation8 + $0xc8] sm:$0xff]
    %v122 = vld [vmem:[#allocation8 + $0xd0] sm:$0xff]
    %v123 = vld [vmem:[#allocation8 + $0xd8] sm:$0xff]
    %v124 = vld [vmem:[#allocation8 + $0xe0] sm:$0xff]
    %v125 = vld [vmem:[#allocation8 + $0xe8] sm:$0xff]
    %v126 = vld [vmem:[#allocation8 + $0xf0] sm:$0xff]
    %v127 = vld [vmem:[#allocation8 + $0xf8] sm:$0xff]
    %v128 = vld [vmem:[%s3] sm:$0x3]
    %v130 = vlaneseq
    %v131 = vshrl.u32 %v130, 7
    %v132 = vsub.s32 0, %v131
    %v133 = vrot.slane %v128, %v132
    %v134 = vlaneseq
    %v135 = vshrl.u32 %v134, 7
    %v136 = vsub.s32 1, %v135
    %v137 = vrot.slane %v128, %v136
    %140 = vmatprep.subr.mxu0 %v97
    %141 = vmatpush1.msra.mxu0 %v96
    %142 = vmatprep.subr.mxu0 %v99
    %143 = vmatpush1.msra.mxu0 %v98
    %144 = vmatprep.subr.mxu0 %v101
    %145 = vmatpush1.msra.mxu0 %v100
    %146 = vmatprep.subr.mxu0 %v103
    %147 = vmatpush1.msra.mxu0 %v102
    %148 = vmatprep.subr.mxu0 %v105
    %149 = vmatpush1.msra.mxu0 %v104
    %150 = vmatprep.subr.mxu0 %v107
    %151 = vmatpush1.msra.mxu0 %v106
    %152 = vmatprep.subr.mxu0 %v109
    %153 = vmatpush1.msra.mxu0 %v108
    %154 = vmatprep.subr.mxu0 %v111
    %155 = vmatpush1.msra.mxu0 %v110
    %156 = vmatprep.subr.mxu0 %v113
    %157 = vmatpush1.msra.mxu0 %v112
    %158 = vmatprep.subr.mxu0 %v115
    %159 = vmatpush1.msra.mxu0 %v114
    %160 = vmatprep.subr.mxu0 %v117
    %161 = vmatpush1.msra.mxu0 %v116
    %162 = vmatprep.subr.mxu0 %v119
    %163 = vmatpush1.msra.mxu0 %v118
    %164 = vmatprep.subr.mxu0 %v121
    %165 = vmatpush1.msra.mxu0 %v120
    %166 = vmatprep.subr.mxu0 %v123
    %167 = vmatpush1.msra.mxu0 %v122
    %168 = vmatprep.subr.mxu0 %v125
    %169 = vmatpush1.msra.mxu0 %v124
    %170 = vmatprep.subr.mxu0 %v127
    %171 = vmatpush1.msra.mxu0 %v126
    %172 = vmatprep.subr.mxu0 0.0
    %173 = vmatpush1.msra.mxu0 0.0
    %174 = vmatprep.subr.mxu0 0.0
    %175 = vmatpush1.msra.mxu0 0.0
    %176 = vmatprep.subr.mxu0 0.0
    %177 = vmatpush1.msra.mxu0 0.0
    %178 = vmatprep.subr.mxu0 0.0
    %179 = vmatpush1.msra.mxu0 0.0
    %180 = vmatprep.subr.mxu0 0.0
    %181 = vmatpush1.msra.mxu0 0.0
    %182 = vmatprep.subr.mxu0 0.0
    %183 = vmatpush1.msra.mxu0 0.0
    %184 = vmatprep.subr.mxu0 0.0
    %185 = vmatpush1.msra.mxu0 0.0
    %186 = vmatprep.subr.mxu0 0.0
    %187 = vmatpush1.msra.mxu0 0.0
    %188 = vmatprep.subr.mxu0 0.0
    %189 = vmatpush1.msra.mxu0 0.0
    %190 = vmatprep.subr.mxu0 0.0
    %191 = vmatpush1.msra.mxu0 0.0
    %192 = vmatprep.subr.mxu0 0.0
    %193 = vmatpush1.msra.mxu0 0.0
    %194 = vmatprep.subr.mxu0 0.0
    %195 = vmatpush1.msra.mxu0 0.0
    %196 = vmatprep.subr.mxu0 0.0
    %197 = vmatpush1.msra.mxu0 0.0
    %198 = vmatprep.subr.mxu0 0.0
    %199 = vmatpush1.msra.mxu0 0.0
    %200 = vmatprep.subr.mxu0 0.0
    %201 = vmatpush1.msra.mxu0 0.0
    %202 = vmatprep.subr.mxu0 0.0
    %203 = vmatpush1.msra.mxu0 0.0
    %204 = vmatprep.mubr.f32.mxu0 0.0
    %205 = vmatmul.mubr.f32.gmra.mrb[0].mxu0 %v80
    %v206 = vpop.f32.mrb[0].mxu0
    %v207 = vadd.f32 %v133, %v206
    %v208 = vpop.f32.mrb[0].mxu0
    %v209 = vadd.f32 %v137, %v208
    %210 = vmatprep.mubr.f32.mxu0 0.0
    %211 = vmatmul.mubr.f32.gmra.mrb[0].mxu0 %v81
    %v212 = vpop.f32.mrb[0].mxu0
    %v213 = vadd.f32 %v133, %v212
    %v214 = vpop.f32.mrb[0].mxu0
    %v215 = vadd.f32 %v137, %v214
    %216 = vmatprep.mubr.f32.mxu0 0.0
    %217 = vmatmul.mubr.f32.gmra.mrb[0].mxu0 %v82
    %v218 = vpop.f32.mrb[0].mxu0
    %v219 = vadd.f32 %v133, %v218
    %v220 = vpop.f32.mrb[0].mxu0
    %v221 = vadd.f32 %v137, %v220
    %222 = vmatprep.mubr.f32.mxu0 0.0
    %223 = vmatmul.mubr.f32.gmra.mrb[0].mxu0 %v83
    %v224 = vpop.f32.mrb[0].mxu0
    %v225 = vadd.f32 %v133, %v224
    %v226 = vpop.f32.mrb[0].mxu0
    %v227 = vadd.f32 %v137, %v226
    %228 = vmatprep.mubr.f32.mxu0 0.0
    %229 = vmatmul.mubr.f32.gmra.mrb[0].mxu0 %v84
    %v230 = vpop.f32.mrb[0].mxu0
    %v231 = vadd.f32 %v133, %v230
    %v232 = vpop.f32.mrb[0].mxu0
    %v233 = vadd.f32 %v137, %v232
    %234 = vmatprep.mubr.f32.mxu0 0.0
    %235 = vmatmul.mubr.f32.gmra.mrb[0].mxu0 %v85
    %v236 = vpop.f32.mrb[0].mxu0
    %v237 = vadd.f32 %v133, %v236
    %v238 = vpop.f32.mrb[0].mxu0
    %v239 = vadd.f32 %v137, %v238
    %240 = vmatprep.mubr.f32.mxu0 0.0
    %241 = vmatmul.mubr.f32.gmra.mrb[0].mxu0 %v86
    %v242 = vpop.f32.mrb[0].mxu0
    %v243 = vadd.f32 %v133, %v242
    %v244 = vpop.f32.mrb[0].mxu0
    %v245 = vadd.f32 %v137, %v244
    %246 = vmatprep.mubr.f32.mxu0 0.0
    %247 = vmatmul.mubr.f32.gmra.mrb[0].mxu0 %v87
    %v248 = vpop.f32.mrb[0].mxu0
    %v249 = vadd.f32 %v133, %v248
    %v250 = vpop.f32.mrb[0].mxu0
    %v251 = vadd.f32 %v137, %v250
    %252 = vmatprep.mubr.f32.mxu0 0.0
    %253 = vmatmul.mubr.f32.gmra.mrb[0].mxu0 %v88
    %v254 = vpop.f32.mrb[0].mxu0
    %v255 = vadd.f32 %v133, %v254
    %v256 = vpop.f32.mrb[0].mxu0
    %v257 = vadd.f32 %v137, %v256
    %258 = vmatprep.mubr.f32.mxu0 0.0
    %259 = vmatmul.mubr.f32.gmra.mrb[0].mxu0 %v89
    %v260 = vpop.f32.mrb[0].mxu0
    %v261 = vadd.f32 %v133, %v260
    %v262 = vpop.f32.mrb[0].mxu0
    %v263 = vadd.f32 %v137, %v262
    %264 = vmatprep.mubr.f32.mxu0 0.0
    %265 = vmatmul.mubr.f32.gmra.mrb[0].mxu0 %v90
    %v266 = vpop.f32.mrb[0].mxu0
    %v267 = vadd.f32 %v133, %v266
    %v268 = vpop.f32.mrb[0].mxu0
    %v269 = vadd.f32 %v137, %v268
    %270 = vmatprep.mubr.f32.mxu0 0.0
    %271 = vmatmul.mubr.f32.gmra.mrb[0].mxu0 %v91
    %v272 = vpop.f32.mrb[0].mxu0
    %v273 = vadd.f32 %v133, %v272
    %v274 = vpop.f32.mrb[0].mxu0
    %v275 = vadd.f32 %v137, %v274
    %276 = vmatprep.mubr.f32.mxu0 0.0
    %277 = vmatmul.mubr.f32.gmra.mrb[0].mxu0 %v92
    %v278 = vpop.f32.mrb[0].mxu0
    %v279 = vadd.f32 %v133, %v278
    %v280 = vpop.f32.mrb[0].mxu0
    %v281 = vadd.f32 %v137, %v280
    %282 = vmatprep.mubr.f32.mxu0 0.0
    %283 = vmatmul.mubr.f32.gmra.mrb[0].mxu0 %v93
    %v284 = vpop.f32.mrb[0].mxu0
    %v285 = vadd.f32 %v133, %v284
    %v286 = vpop.f32.mrb[0].mxu0
    %v287 = vadd.f32 %v137, %v286
    %288 = vmatprep.mubr.f32.mxu0 0.0
    %289 = vmatmul.mubr.f32.gmra.mrb[0].mxu0 %v94
    %v290 = vpop.f32.mrb[0].mxu0
    %v291 = vadd.f32 %v133, %v290
    %v292 = vpop.f32.mrb[0].mxu0
    %v293 = vadd.f32 %v137, %v292
    %294 = vmatprep.mubr.f32.mxu0 0.0
    %295 = vmatmul.mubr.f32.gmra.mrb[0].mxu0 %v95
    %v296 = vpop.f32.mrb[0].mxu0
    %v297 = vadd.f32 %v133, %v296
    %v298 = vpop.f32.mrb[0].mxu0
    %v299 = vadd.f32 %v137, %v298
    %300 = vdwg.mxu0
    %301 = vst [vmem:[#allocation2] sm:$0xff] %v207
    %302 = vst [vmem:[#allocation2 + $0x8] sm:$0xff] %v209
    %303 = vst [vmem:[#allocation2 + $0x10] sm:$0xff] %v213
    %304 = vst [vmem:[#allocation2 + $0x18] sm:$0xff] %v215
    %305 = vst [vmem:[#allocation2 + $0x20] sm:$0xff] %v219
    %306 = vst [vmem:[#allocation2 + $0x28] sm:$0xff] %v221
    %307 = vst [vmem:[#allocation2 + $0x30] sm:$0xff] %v225
    %308 = vst [vmem:[#allocation2 + $0x38] sm:$0xff] %v227
    %309 = vst [vmem:[#allocation2 + $0x40] sm:$0xff] %v231
    %310 = vst [vmem:[#allocation2 + $0x48] sm:$0xff] %v233
    %311 = vst [vmem:[#allocation2 + $0x50] sm:$0xff] %v237
    %312 = vst [vmem:[#allocation2 + $0x58] sm:$0xff] %v239
    %313 = vst [vmem:[#allocation2 + $0x60] sm:$0xff] %v243
    %314 = vst [vmem:[#allocation2 + $0x68] sm:$0xff] %v245
    %315 = vst [vmem:[#allocation2 + $0x70] sm:$0xff] %v249
    %316 = vst [vmem:[#allocation2 + $0x78] sm:$0xff] %v251
    %317 = vst [vmem:[#allocation2 + $0x80] sm:$0xff] %v255
    %318 = vst [vmem:[#allocation2 + $0x88] sm:$0xff] %v257
    %319 = vst [vmem:[#allocation2 + $0x90] sm:$0xff] %v261
    %320 = vst [vmem:[#allocation2 + $0x98] sm:$0xff] %v263
    %321 = vst [vmem:[#allocation2 + $0xa0] sm:$0xff] %v267
    %322 = vst [vmem:[#allocation2 + $0xa8] sm:$0xff] %v269
    %323 = vst [vmem:[#allocation2 + $0xb0] sm:$0xff] %v273
    %324 = vst [vmem:[#allocation2 + $0xb8] sm:$0xff] %v275
    %325 = vst [vmem:[#allocation2 + $0xc0] sm:$0xff] %v279
    %326 = vst [vmem:[#allocation2 + $0xc8] sm:$0xff] %v281
    %327 = vst [vmem:[#allocation2 + $0xd0] sm:$0xff] %v285
    %328 = vst [vmem:[#allocation2 + $0xd8] sm:$0xff] %v287
    %329 = vst [vmem:[#allocation2 + $0xe0] sm:$0xff] %v291
    %330 = vst [vmem:[#allocation2 + $0xe8] sm:$0xff] %v293
    %331 = vst [vmem:[#allocation2 + $0xf0] sm:$0xff] %v297
    %332 = vst [vmem:[#allocation2 + $0xf8] sm:$0xff] %v299
    %v333 = vld [vmem:[#allocation2] sm:$0xff]
    %v334 = vld [vmem:[#allocation2 + $0x8] sm:$0xff]
    %v335 = vld [vmem:[#allocation10] sm:$0xff]
    %v336 = vld [vmem:[#allocation10 + $0x8] sm:$0xff]
    %v337 = vld [vmem:[#allocation10 + $0x10] sm:$0xff]
    %v338 = vld [vmem:[#allocation10 + $0x18] sm:$0xff]
    %v339 = vld [vmem:[#allocation10 + $0x20] sm:$0xff]
    %v340 = vld [vmem:[#allocation10 + $0x28] sm:$0xff]
    %v341 = vld [vmem:[#allocation10 + $0x30] sm:$0xff]
    %v342 = vld [vmem:[#allocation10 + $0x38] sm:$0xff]
    %v343 = vld [vmem:[#allocation10 + $0x40] sm:$0xff]
    %v344 = vld [vmem:[#allocation10 + $0x48] sm:$0xff]
    %v345 = vld [vmem:[#allocation10 + $0x50] sm:$0xff]
    %v346 = vld [vmem:[#allocation10 + $0x58] sm:$0xff]
    %v347 = vld [vmem:[#allocation10 + $0x60] sm:$0xff]
    %v348 = vld [vmem:[#allocation10 + $0x68] sm:$0xff]
    %v349 = vld [vmem:[#allocation10 + $0x70] sm:$0xff]
    %v350 = vld [vmem:[#allocation10 + $0x78] sm:$0xff]
    %vm351 = vcmask 523264
    %v353 = vsel %vm351, 0.0, 0
    %355 = vmatprep.subr.mxu0 %v336
    %356 = vmatpush1.msra.mxu0 %v335
    %357 = vmatprep.subr.mxu0 %v338
    %358 = vmatpush1.msra.mxu0 %v337
    %359 = vmatprep.subr.mxu0 %v340
    %360 = vmatpush1.msra.mxu0 %v339
    %361 = vmatprep.subr.mxu0 %v342
    %362 = vmatpush1.msra.mxu0 %v341
    %363 = vmatprep.subr.mxu0 %v344
    %364 = vmatpush1.msra.mxu0 %v343
    %365 = vmatprep.subr.mxu0 %v346
    %366 = vmatpush1.msra.mxu0 %v345
    %367 = vmatprep.subr.mxu0 %v348
    %368 = vmatpush1.msra.mxu0 %v347
    %369 = vmatprep.subr.mxu0 %v350
    %370 = vmatpush1.msra.mxu0 %v349
    %371 = vmatprep.subr.mxu0 0.0
    %372 = vmatpush1.msra.mxu0 0.0
    %373 = vmatprep.subr.mxu0 0.0
    %374 = vmatpush1.msra.mxu0 0.0
    %375 = vmatprep.subr.mxu0 0.0
    %376 = vmatpush1.msra.mxu0 0.0
    %377 = vmatprep.subr.mxu0 0.0
    %378 = vmatpush1.msra.mxu0 0.0
    %379 = vmatprep.subr.mxu0 0.0
    %380 = vmatpush1.msra.mxu0 0.0
    %381 = vmatprep.subr.mxu0 0.0
    %382 = vmatpush1.msra.mxu0 0.0
    %383 = vmatprep.subr.mxu0 0.0
    %384 = vmatpush1.msra.mxu0 0.0
    %385 = vmatprep.subr.mxu0 0.0
    %386 = vmatpush1.msra.mxu0 0.0
    %387 = vmatprep.subr.mxu0 0.0
    %388 = vmatpush1.msra.mxu0 0.0
    %389 = vmatprep.subr.mxu0 0.0
    %390 = vmatpush1.msra.mxu0 0.0
    %391 = vmatprep.subr.mxu0 0.0
    %392 = vmatpush1.msra.mxu0 0.0
    %393 = vmatprep.subr.mxu0 0.0
    %394 = vmatpush1.msra.mxu0 0.0
    %395 = vmatprep.subr.mxu0 0.0
    %396 = vmatpush1.msra.mxu0 0.0
    %397 = vmatprep.subr.mxu0 0.0
    %398 = vmatpush1.msra.mxu0 0.0
    %399 = vmatprep.subr.mxu0 0.0
    %400 = vmatpush1.msra.mxu0 0.0
    %401 = vmatprep.subr.mxu0 0.0
    %402 = vmatpush1.msra.mxu0 0.0
    %403 = vmatprep.subr.mxu0 0.0
    %404 = vmatpush1.msra.mxu0 0.0
    %405 = vmatprep.subr.mxu0 0.0
    %406 = vmatpush1.msra.mxu0 0.0
    %407 = vmatprep.subr.mxu0 0.0
    %408 = vmatpush1.msra.mxu0 0.0
    %409 = vmatprep.subr.mxu0 0.0
    %410 = vmatpush1.msra.mxu0 0.0
    %411 = vmatprep.subr.mxu0 0.0
    %412 = vmatpush1.msra.mxu0 0.0
    %413 = vmatprep.subr.mxu0 0.0
    %414 = vmatpush1.msra.mxu0 0.0
    %415 = vmatprep.subr.mxu0 0.0
    %416 = vmatpush1.msra.mxu0 0.0
    %417 = vmatprep.subr.mxu0 0.0
    %418 = vmatpush1.msra.mxu0 0.0
    %419 = vmatprep.mubr.f32.mxu0 0.0
    %420 = vmatmul.mubr.f32.gmra.mrb[0].mxu0 %v353
    %v421 = vpop.f32.mrb[0].mxu0
    %v422 = vadd.f32 0.0, %v421
    %v423 = vpop.f32.mrb[0].mxu0
    %v424 = vadd.f32 0.0, %v423
    %425 = vdwg.mxu0
    %v426 = vadd.f32 %v333, %v422
    %v427 = vadd.f32 %v334, %v424
    %v428 = vxor.u32 %v426, 2147483648
    %v429 = vxor.u32 %v427, 2147483648
    %v430 = vmul.f32 %v428, 1.442695
    %v431 = vpow.pop %v430
    %v432 = vmul.f32 %v429, 1.442695
    %v433 = vpow.pop %v432
    %v434 = vadd.f32 %v431, 1.0
    %v435 = vadd.f32 %v433, 1.0
    %v436 = vrcp.pop %v434
    %v437 = vmul.f32 1.0, %v436
    %v438 = vrcp.pop %v435
    %v439 = vmul.f32 1.0, %v438
    %v440 = vmul.f32 %v439, 2.0
    %v441 = vsub.f32 %v440, 1.0
    %v442 = vmul.f32 %v437, 0.0
    %v443 = vmul.f32 %v437, %v441
    %445 = vrot.lane.b32.xlu0 %v443, 64
    %v446 = vpop.permute.xlu0 %445
    %v448 = vadd.f32 %v442, %v446
    %v449 = vtanh.pop %v448
    %v450 = vmul.f32 %v439, %v449
    %v451 = vld [vmem:[#allocation2 + $0x10] sm:$0xff]
    %v452 = vld [vmem:[#allocation2 + $0x18] sm:$0xff]
    %454 = vrot.lane.b32.xlu0 %v450, 64
    %v455 = vpop.permute.xlu0 %454
    %v456 = vsel %vm351, %v455, 0
    %458 = vmatprep.subr.mxu0 %v336
    %459 = vmatpush1.msra.mxu0 %v335
    %460 = vmatprep.subr.mxu0 %v338
    %461 = vmatpush1.msra.mxu0 %v337
    %462 = vmatprep.subr.mxu0 %v340
    %463 = vmatpush1.msra.mxu0 %v339
    %464 = vmatprep.subr.mxu0 %v342
    %465 = vmatpush1.msra.mxu0 %v341
    %466 = vmatprep.subr.mxu0 %v344
    %467 = vmatpush1.msra.mxu0 %v343
    %468 = vmatprep.subr.mxu0 %v346
    %469 = vmatpush1.msra.mxu0 %v345
    %470 = vmatprep.subr.mxu0 %v348
    %471 = vmatpush1.msra.mxu0 %v347
    %472 = vmatprep.subr.mxu0 %v350
    %473 = vmatpush1.msra.mxu0 %v349
    %474 = vmatprep.subr.mxu0 0.0
    %475 = vmatpush1.msra.mxu0 0.0
    %476 = vmatprep.subr.mxu0 0.0
    %477 = vmatpush1.msra.mxu0 0.0
    %478 = vmatprep.subr.mxu0 0.0
    %479 = vmatpush1.msra.mxu0 0.0
    %480 = vmatprep.subr.mxu0 0.0
    %481 = vmatpush1.msra.mxu0 0.0
    %482 = vmatprep.subr.mxu0 0.0
    %483 = vmatpush1.msra.mxu0 0.0
    %484 = vmatprep.subr.mxu0 0.0
    %485 = vmatpush1.msra.mxu0 0.0
    %486 = vmatprep.subr.mxu0 0.0
    %487 = vmatpush1.msra.mxu0 0.0
    %488 = vmatprep.subr.mxu0 0.0
    %489 = vmatpush1.msra.mxu0 0.0
    %490 = vmatprep.subr.mxu0 0.0
    %491 = vmatpush1.msra.mxu0 0.0
    %492 = vmatprep.subr.mxu0 0.0
    %493 = vmatpush1.msra.mxu0 0.0
    %494 = vmatprep.subr.mxu0 0.0
    %495 = vmatpush1.msra.mxu0 0.0
    %496 = vmatprep.subr.mxu0 0.0
    %497 = vmatpush1.msra.mxu0 0.0
    %498 = vmatprep.subr.mxu0 0.0
    %499 = vmatpush1.msra.mxu0 0.0
    %500 = vmatprep.subr.mxu0 0.0
    %501 = vmatpush1.msra.mxu0 0.0
    %502 = vmatprep.subr.mxu0 0.0
    %503 = vmatpush1.msra.mxu0 0.0
    %504 = vmatprep.subr.mxu0 0.0
    %505 = vmatpush1.msra.mxu0 0.0
    %506 = vmatprep.subr.mxu0 0.0
    %507 = vmatpush1.msra.mxu0 0.0
    %508 = vmatprep.subr.mxu0 0.0
    %509 = vmatpush1.msra.mxu0 0.0
    %510 = vmatprep.subr.mxu0 0.0
    %511 = vmatpush1.msra.mxu0 0.0
    %512 = vmatprep.subr.mxu0 0.0
    %513 = vmatpush1.msra.mxu0 0.0
    %514 = vmatprep.subr.mxu0 0.0
    %515 = vmatpush1.msra.mxu0 0.0
    %516 = vmatprep.subr.mxu0 0.0
    %517 = vmatpush1.msra.mxu0 0.0
    %518 = vmatprep.subr.mxu0 0.0
    %519 = vmatpush1.msra.mxu0 0.0
    %520 = vmatprep.subr.mxu0 0.0
    %521 = vmatpush1.msra.mxu0 0.0
    %522 = vmatprep.mubr.f32.mxu0 0.0
    %523 = vmatmul.mubr.f32.gmra.mrb[0].mxu0 %v456
    %v524 = vpop.f32.mrb[0].mxu0
    %v525 = vadd.f32 0.0, %v524
    %v526 = vpop.f32.mrb[0].mxu0
    %v527 = vadd.f32 0.0, %v526
    %528 = vdwg.mxu0
    %v529 = vadd.f32 %v451, %v525
    %v530 = vadd.f32 %v452, %v527
    %v531 = vxor.u32 %v529, 2147483648
    %v532 = vxor.u32 %v530, 2147483648
    %v533 = vmul.f32 %v531, 1.442695
    %v534 = vpow.pop %v533
    %v535 = vmul.f32 %v532, 1.442695
    %v536 = vpow.pop %v535
    %v537 = vadd.f32 %v534, 1.0
    %v538 = vadd.f32 %v536, 1.0
    %v539 = vrcp.pop %v537
    %v540 = vmul.f32 1.0, %v539
    %v541 = vrcp.pop %v538
    %v542 = vmul.f32 1.0, %v541
    %v543 = vmul.f32 %v542, 2.0
    %v544 = vsub.f32 %v543, 1.0
    %v545 = vmul.f32 %v540, %v448
    %v546 = vmul.f32 %v540, %v544
    %548 = vrot.lane.b32.xlu0 %v546, 64
    %v549 = vpop.permute.xlu0 %548
    %v551 = vadd.f32 %v545, %v549
    %v552 = vtanh.pop %v551
    %v553 = vmul.f32 %v542, %v552
    %v554 = vld [vmem:[#allocation2 + $0x20] sm:$0xff]
    %v555 = vld [vmem:[#allocation2 + $0x28] sm:$0xff]
    %557 = vrot.lane.b32.xlu0 %v553, 64
    %v558 = vpop.permute.xlu0 %557
    %v559 = vsel %vm351, %v558, 0
    %561 = vmatprep.subr.mxu0 %v336
    %562 = vmatpush1.msra.mxu0 %v335
    %563 = vmatprep.subr.mxu0 %v338
    %564 = vmatpush1.msra.mxu0 %v337
    %565 = vmatprep.subr.mxu0 %v340
    %566 = vmatpush1.msra.mxu0 %v339
    %567 = vmatprep.subr.mxu0 %v342
    %568 = vmatpush1.msra.mxu0 %v341
    %569 = vmatprep.subr.mxu0 %v344
    %570 = vmatpush1.msra.mxu0 %v343
    %571 = vmatprep.subr.mxu0 %v346
    %572 = vmatpush1.msra.mxu0 %v345
    %573 = vmatprep.subr.mxu0 %v348
    %574 = vmatpush1.msra.mxu0 %v347
    %575 = vmatprep.subr.mxu0 %v350
    %576 = vmatpush1.msra.mxu0 %v349
    %577 = vmatprep.subr.mxu0 0.0
    %578 = vmatpush1.msra.mxu0 0.0
    %579 = vmatprep.subr.mxu0 0.0
    %580 = vmatpush1.msra.mxu0 0.0
    %581 = vmatprep.subr.mxu0 0.0
    %582 = vmatpush1.msra.mxu0 0.0
    %583 = vmatprep.subr.mxu0 0.0
    %584 = vmatpush1.msra.mxu0 0.0
    %585 = vmatprep.subr.mxu0 0.0
    %586 = vmatpush1.msra.mxu0 0.0
    %587 = vmatprep.subr.mxu0 0.0
    %588 = vmatpush1.msra.mxu0 0.0
    %589 = vmatprep.subr.mxu0 0.0
    %590 = vmatpush1.msra.mxu0 0.0
    %591 = vmatprep.subr.mxu0 0.0
    %592 = vmatpush1.msra.mxu0 0.0
    %593 = vmatprep.subr.mxu0 0.0
    %594 = vmatpush1.msra.mxu0 0.0
    %595 = vmatprep.subr.mxu0 0.0
    %596 = vmatpush1.msra.mxu0 0.0
    %597 = vmatprep.subr.mxu0 0.0
    %598 = vmatpush1.msra.mxu0 0.0
    %599 = vmatprep.subr.mxu0 0.0
    %600 = vmatpush1.msra.mxu0 0.0
    %601 = vmatprep.subr.mxu0 0.0
    %602 = vmatpush1.msra.mxu0 0.0
    %603 = vmatprep.subr.mxu0 0.0
    %604 = vmatpush1.msra.mxu0 0.0
    %605 = vmatprep.subr.mxu0 0.0
    %606 = vmatpush1.msra.mxu0 0.0
    %607 = vmatprep.subr.mxu0 0.0
    %608 = vmatpush1.msra.mxu0 0.0
    %609 = vmatprep.subr.mxu0 0.0
    %610 = vmatpush1.msra.mxu0 0.0
    %611 = vmatprep.subr.mxu0 0.0
    %612 = vmatpush1.msra.mxu0 0.0
    %613 = vmatprep.subr.mxu0 0.0
    %614 = vmatpush1.msra.mxu0 0.0
    %615 = vmatprep.subr.mxu0 0.0
    %616 = vmatpush1.msra.mxu0 0.0
    %617 = vmatprep.subr.mxu0 0.0
    %618 = vmatpush1.msra.mxu0 0.0
    %619 = vmatprep.subr.mxu0 0.0
    %620 = vmatpush1.msra.mxu0 0.0
    %621 = vmatprep.subr.mxu0 0.0
    %622 = vmatpush1.msra.mxu0 0.0
    %623 = vmatprep.subr.mxu0 0.0
    %624 = vmatpush1.msra.mxu0 0.0
    %625 = vmatprep.mubr.f32.mxu0 0.0
    %626 = vmatmul.mubr.f32.gmra.mrb[0].mxu0 %v559
    %v627 = vpop.f32.mrb[0].mxu0
    %v628 = vadd.f32 0.0, %v627
    %v629 = vpop.f32.mrb[0].mxu0
    %v630 = vadd.f32 0.0, %v629
    %631 = vdwg.mxu0
    %v632 = vadd.f32 %v554, %v628
    %v633 = vadd.f32 %v555, %v630
    %v634 = vxor.u32 %v632, 2147483648
    %v635 = vxor.u32 %v633, 2147483648
    %v636 = vmul.f32 %v634, 1.442695
    %v637 = vpow.pop %v636
    %v638 = vmul.f32 %v635, 1.442695
    %v639 = vpow.pop %v638
    %v640 = vadd.f32 %v637, 1.0
    %v641 = vadd.f32 %v639, 1.0
    %v642 = vrcp.pop %v640
    %v643 = vmul.f32 1.0, %v642
    %v644 = vrcp.pop %v641
    %v645 = vmul.f32 1.0, %v644
    %v646 = vmul.f32 %v645, 2.0
    %v647 = vsub.f32 %v646, 1.0
    %v648 = vmul.f32 %v643, %v551
    %v649 = vmul.f32 %v643, %v647
    %651 = vrot.lane.b32.xlu0 %v649, 64
    %v652 = vpop.permute.xlu0 %651
    %v654 = vadd.f32 %v648, %v652
    %v655 = vtanh.pop %v654
    %v656 = vmul.f32 %v645, %v655
    %v657 = vld [vmem:[#allocation2 + $0x30] sm:$0xff]
    %v658 = vld [vmem:[#allocation2 + $0x38] sm:$0xff]
    %660 = vrot.lane.b32.xlu0 %v656, 64
    %v661 = vpop.permute.xlu0 %660
    %v662 = vsel %vm351, %v661, 0
    %664 = vmatprep.subr.mxu0 %v336
    %665 = vmatpush1.msra.mxu0 %v335
    %666 = vmatprep.subr.mxu0 %v338
    %667 = vmatpush1.msra.mxu0 %v337
    %668 = vmatprep.subr.mxu0 %v340
    %669 = vmatpush1.msra.mxu0 %v339
    %670 = vmatprep.subr.mxu0 %v342
    %671 = vmatpush1.msra.mxu0 %v341
    %672 = vmatprep.subr.mxu0 %v344
    %673 = vmatpush1.msra.mxu0 %v343
    %674 = vmatprep.subr.mxu0 %v346
    %675 = vmatpush1.msra.mxu0 %v345
    %676 = vmatprep.subr.mxu0 %v348
    %677 = vmatpush1.msra.mxu0 %v347
    %678 = vmatprep.subr.mxu0 %v350
    %679 = vmatpush1.msra.mxu0 %v349
    %680 = vmatprep.subr.mxu0 0.0
    %681 = vmatpush1.msra.mxu0 0.0
    %682 = vmatprep.subr.mxu0 0.0
    %683 = vmatpush1.msra.mxu0 0.0
    %684 = vmatprep.subr.mxu0 0.0
    %685 = vmatpush1.msra.mxu0 0.0
    %686 = vmatprep.subr.mxu0 0.0
    %687 = vmatpush1.msra.mxu0 0.0
    %688 = vmatprep.subr.mxu0 0.0
    %689 = vmatpush1.msra.mxu0 0.0
    %690 = vmatprep.subr.mxu0 0.0
    %691 = vmatpush1.msra.mxu0 0.0
    %692 = vmatprep.subr.mxu0 0.0
    %693 = vmatpush1.msra.mxu0 0.0
    %694 = vmatprep.subr.mxu0 0.0
    %695 = vmatpush1.msra.mxu0 0.0
    %696 = vmatprep.subr.mxu0 0.0
    %697 = vmatpush1.msra.mxu0 0.0
    %698 = vmatprep.subr.mxu0 0.0
    %699 = vmatpush1.msra.mxu0 0.0
    %700 = vmatprep.subr.mxu0 0.0
    %701 = vmatpush1.msra.mxu0 0.0
    %702 = vmatprep.subr.mxu0 0.0
    %703 = vmatpush1.msra.mxu0 0.0
    %704 = vmatprep.subr.mxu0 0.0
    %705 = vmatpush1.msra.mxu0 0.0
    %706 = vmatprep.subr.mxu0 0.0
    %707 = vmatpush1.msra.mxu0 0.0
    %708 = vmatprep.subr.mxu0 0.0
    %709 = vmatpush1.msra.mxu0 0.0
    %710 = vmatprep.subr.mxu0 0.0
    %711 = vmatpush1.msra.mxu0 0.0
    %712 = vmatprep.subr.mxu0 0.0
    %713 = vmatpush1.msra.mxu0 0.0
    %714 = vmatprep.subr.mxu0 0.0
    %715 = vmatpush1.msra.mxu0 0.0
    %716 = vmatprep.subr.mxu0 0.0
    %717 = vmatpush1.msra.mxu0 0.0
    %718 = vmatprep.subr.mxu0 0.0
    %719 = vmatpush1.msra.mxu0 0.0
    %720 = vmatprep.subr.mxu0 0.0
    %721 = vmatpush1.msra.mxu0 0.0
    %722 = vmatprep.subr.mxu0 0.0
    %723 = vmatpush1.msra.mxu0 0.0
    %724 = vmatprep.subr.mxu0 0.0
    %725 = vmatpush1.msra.mxu0 0.0
    %726 = vmatprep.subr.mxu0 0.0
    %727 = vmatpush1.msra.mxu0 0.0
    %728 = vmatprep.mubr.f32.mxu0 0.0
    %729 = vmatmul.mubr.f32.gmra.mrb[0].mxu0 %v662
    %v730 = vpop.f32.mrb[0].mxu0
    %v731 = vadd.f32 0.0, %v730
    %v732 = vpop.f32.mrb[0].mxu0
    %v733 = vadd.f32 0.0, %v732
    %734 = vdwg.mxu0
    %v735 = vadd.f32 %v657, %v731
    %v736 = vadd.f32 %v658, %v733
    %v737 = vxor.u32 %v735, 2147483648
    %v738 = vxor.u32 %v736, 2147483648
    %v739 = vmul.f32 %v737, 1.442695
    %v740 = vpow.pop %v739
    %v741 = vmul.f32 %v738, 1.442695
    %v742 = vpow.pop %v741
    %v743 = vadd.f32 %v740, 1.0
    %v744 = vadd.f32 %v742, 1.0
    %v745 = vrcp.pop %v743
    %v746 = vmul.f32 1.0, %v745
    %v747 = vrcp.pop %v744
    %v748 = vmul.f32 1.0, %v747
    %v749 = vmul.f32 %v748, 2.0
    %v750 = vsub.f32 %v749, 1.0
    %v751 = vmul.f32 %v746, %v654
    %v752 = vmul.f32 %v746, %v750
    %754 = vrot.lane.b32.xlu0 %v752, 64
    %v755 = vpop.permute.xlu0 %754
    %v757 = vadd.f32 %v751, %v755
    %v758 = vtanh.pop %v757
    %v759 = vmul.f32 %v748, %v758
    %v760 = vld [vmem:[#allocation2 + $0x40] sm:$0xff]
    %v761 = vld [vmem:[#allocation2 + $0x48] sm:$0xff]
    %763 = vrot.lane.b32.xlu0 %v759, 64
    %v764 = vpop.permute.xlu0 %763
    %v765 = vsel %vm351, %v764, 0
    %767 = vmatprep.subr.mxu0 %v336
    %768 = vmatpush1.msra.mxu0 %v335
    %769 = vmatprep.subr.mxu0 %v338
    %770 = vmatpush1.msra.mxu0 %v337
    %771 = vmatprep.subr.mxu0 %v340
    %772 = vmatpush1.msra.mxu0 %v339
    %773 = vmatprep.subr.mxu0 %v342
    %774 = vmatpush1.msra.mxu0 %v341
    %775 = vmatprep.subr.mxu0 %v344
    %776 = vmatpush1.msra.mxu0 %v343
    %777 = vmatprep.subr.mxu0 %v346
    %778 = vmatpush1.msra.mxu0 %v345
    %779 = vmatprep.subr.mxu0 %v348
    %780 = vmatpush1.msra.mxu0 %v347
    %781 = vmatprep.subr.mxu0 %v350
    %782 = vmatpush1.msra.mxu0 %v349
    %783 = vmatprep.subr.mxu0 0.0
    %784 = vmatpush1.msra.mxu0 0.0
    %785 = vmatprep.subr.mxu0 0.0
    %786 = vmatpush1.msra.mxu0 0.0
    %787 = vmatprep.subr.mxu0 0.0
    %788 = vmatpush1.msra.mxu0 0.0
    %789 = vmatprep.subr.mxu0 0.0
    %790 = vmatpush1.msra.mxu0 0.0
    %791 = vmatprep.subr.mxu0 0.0
    %792 = vmatpush1.msra.mxu0 0.0
    %793 = vmatprep.subr.mxu0 0.0
    %794 = vmatpush1.msra.mxu0 0.0
    %795 = vmatprep.subr.mxu0 0.0
    %796 = vmatpush1.msra.mxu0 0.0
    %797 = vmatprep.subr.mxu0 0.0
    %798 = vmatpush1.msra.mxu0 0.0
    %799 = vmatprep.subr.mxu0 0.0
    %800 = vmatpush1.msra.mxu0 0.0
    %801 = vmatprep.subr.mxu0 0.0
    %802 = vmatpush1.msra.mxu0 0.0
    %803 = vmatprep.subr.mxu0 0.0
    %804 = vmatpush1.msra.mxu0 0.0
    %805 = vmatprep.subr.mxu0 0.0
    %806 = vmatpush1.msra.mxu0 0.0
    %807 = vmatprep.subr.mxu0 0.0
    %808 = vmatpush1.msra.mxu0 0.0
    %809 = vmatprep.subr.mxu0 0.0
    %810 = vmatpush1.msra.mxu0 0.0
    %811 = vmatprep.subr.mxu0 0.0
    %812 = vmatpush1.msra.mxu0 0.0
    %813 = vmatprep.subr.mxu0 0.0
    %814 = vmatpush1.msra.mxu0 0.0
    %815 = vmatprep.subr.mxu0 0.0
    %816 = vmatpush1.msra.mxu0 0.0
    %817 = vmatprep.subr.mxu0 0.0
    %818 = vmatpush1.msra.mxu0 0.0
    %819 = vmatprep.subr.mxu0 0.0
    %820 = vmatpush1.msra.mxu0 0.0
    %821 = vmatprep.subr.mxu0 0.0
    %822 = vmatpush1.msra.mxu0 0.0
    %823 = vmatprep.subr.mxu0 0.0
    %824 = vmatpush1.msra.mxu0 0.0
    %825 = vmatprep.subr.mxu0 0.0
    %826 = vmatpush1.msra.mxu0 0.0
    %827 = vmatprep.subr.mxu0 0.0
    %828 = vmatpush1.msra.mxu0 0.0
    %829 = vmatprep.subr.mxu0 0.0
    %830 = vmatpush1.msra.mxu0 0.0
    %831 = vmatprep.mubr.f32.mxu0 0.0
    %832 = vmatmul.mubr.f32.gmra.mrb[0].mxu0 %v765
    %v833 = vpop.f32.mrb[0].mxu0
    %v834 = vadd.f32 0.0, %v833
    %v835 = vpop.f32.mrb[0].mxu0
    %v836 = vadd.f32 0.0, %v835
    %837 = vdwg.mxu0
    %v838 = vadd.f32 %v760, %v834
    %v839 = vadd.f32 %v761, %v836
    %v840 = vxor.u32 %v838, 2147483648
    %v841 = vxor.u32 %v839, 2147483648
    %v842 = vmul.f32 %v840, 1.442695
    %v843 = vpow.pop %v842
    %v844 = vmul.f32 %v841, 1.442695
    %v845 = vpow.pop %v844
    %v846 = vadd.f32 %v843, 1.0
    %v847 = vadd.f32 %v845, 1.0
    %v848 = vrcp.pop %v846
    %v849 = vmul.f32 1.0, %v848
    %v850 = vrcp.pop %v847
    %v851 = vmul.f32 1.0, %v850
    %v852 = vmul.f32 %v851, 2.0
    %v853 = vsub.f32 %v852, 1.0
    %v854 = vmul.f32 %v849, %v757
    %v855 = vmul.f32 %v849, %v853
    %857 = vrot.lane.b32.xlu0 %v855, 64
    %v858 = vpop.permute.xlu0 %857
    %v860 = vadd.f32 %v854, %v858
    %v861 = vtanh.pop %v860
    %v862 = vmul.f32 %v851, %v861
    %v863 = vld [vmem:[#allocation2 + $0x50] sm:$0xff]
    %v864 = vld [vmem:[#allocation2 + $0x58] sm:$0xff]
    %866 = vrot.lane.b32.xlu0 %v862, 64
    %v867 = vpop.permute.xlu0 %866
    %v868 = vsel %vm351, %v867, 0
    %870 = vmatprep.subr.mxu0 %v336
    %871 = vmatpush1.msra.mxu0 %v335
    %872 = vmatprep.subr.mxu0 %v338
    %873 = vmatpush1.msra.mxu0 %v337
    %874 = vmatprep.subr.mxu0 %v340
    %875 = vmatpush1.msra.mxu0 %v339
    %876 = vmatprep.subr.mxu0 %v342
    %877 = vmatpush1.msra.mxu0 %v341
    %878 = vmatprep.subr.mxu0 %v344
    %879 = vmatpush1.msra.mxu0 %v343
    %880 = vmatprep.subr.mxu0 %v346
    %881 = vmatpush1.msra.mxu0 %v345
    %882 = vmatprep.subr.mxu0 %v348
    %883 = vmatpush1.msra.mxu0 %v347
    %884 = vmatprep.subr.mxu0 %v350
    %885 = vmatpush1.msra.mxu0 %v349
    %886 = vmatprep.subr.mxu0 0.0
    %887 = vmatpush1.msra.mxu0 0.0
    %888 = vmatprep.subr.mxu0 0.0
    %889 = vmatpush1.msra.mxu0 0.0
    %890 = vmatprep.subr.mxu0 0.0
    %891 = vmatpush1.msra.mxu0 0.0
    %892 = vmatprep.subr.mxu0 0.0
    %893 = vmatpush1.msra.mxu0 0.0
    %894 = vmatprep.subr.mxu0 0.0
    %895 = vmatpush1.msra.mxu0 0.0
    %896 = vmatprep.subr.mxu0 0.0
    %897 = vmatpush1.msra.mxu0 0.0
    %898 = vmatprep.subr.mxu0 0.0
    %899 = vmatpush1.msra.mxu0 0.0
    %900 = vmatprep.subr.mxu0 0.0
    %901 = vmatpush1.msra.mxu0 0.0
    %902 = vmatprep.subr.mxu0 0.0
    %903 = vmatpush1.msra.mxu0 0.0
    %904 = vmatprep.subr.mxu0 0.0
    %905 = vmatpush1.msra.mxu0 0.0
    %906 = vmatprep.subr.mxu0 0.0
    %907 = vmatpush1.msra.mxu0 0.0
    %908 = vmatprep.subr.mxu0 0.0
    %909 = vmatpush1.msra.mxu0 0.0
    %910 = vmatprep.subr.mxu0 0.0
    %911 = vmatpush1.msra.mxu0 0.0
    %912 = vmatprep.subr.mxu0 0.0
    %913 = vmatpush1.msra.mxu0 0.0
    %914 = vmatprep.subr.mxu0 0.0
    %915 = vmatpush1.msra.mxu0 0.0
    %916 = vmatprep.subr.mxu0 0.0
    %917 = vmatpush1.msra.mxu0 0.0
    %918 = vmatprep.subr.mxu0 0.0
    %919 = vmatpush1.msra.mxu0 0.0
    %920 = vmatprep.subr.mxu0 0.0
    %921 = vmatpush1.msra.mxu0 0.0
    %922 = vmatprep.subr.mxu0 0.0
    %923 = vmatpush1.msra.mxu0 0.0
    %924 = vmatprep.subr.mxu0 0.0
    %925 = vmatpush1.msra.mxu0 0.0
    %926 = vmatprep.subr.mxu0 0.0
    %927 = vmatpush1.msra.mxu0 0.0
    %928 = vmatprep.subr.mxu0 0.0
    %929 = vmatpush1.msra.mxu0 0.0
    %930 = vmatprep.subr.mxu0 0.0
    %931 = vmatpush1.msra.mxu0 0.0
    %932 = vmatprep.subr.mxu0 0.0
    %933 = vmatpush1.msra.mxu0 0.0
    %934 = vmatprep.mubr.f32.mxu0 0.0
    %935 = vmatmul.mubr.f32.gmra.mrb[0].mxu0 %v868
    %v936 = vpop.f32.mrb[0].mxu0
    %v937 = vadd.f32 0.0, %v936
    %v938 = vpop.f32.mrb[0].mxu0
    %v939 = vadd.f32 0.0, %v938
    %940 = vdwg.mxu0
    %v941 = vadd.f32 %v863, %v937
    %v942 = vadd.f32 %v864, %v939
    %v943 = vxor.u32 %v941, 2147483648
    %v944 = vxor.u32 %v942, 2147483648
    %v945 = vmul.f32 %v943, 1.442695
    %v946 = vpow.pop %v945
    %v947 = vmul.f32 %v944, 1.442695
    %v948 = vpow.pop %v947
    %v949 = vadd.f32 %v946, 1.0
    %v950 = vadd.f32 %v948, 1.0
    %v951 = vrcp.pop %v949
    %v952 = vmul.f32 1.0, %v951
    %v953 = vrcp.pop %v950
    %v954 = vmul.f32 1.0, %v953
    %v955 = vmul.f32 %v954, 2.0
    %v956 = vsub.f32 %v955, 1.0
    %v957 = vmul.f32 %v952, %v860
    %v958 = vmul.f32 %v952, %v956
    %960 = vrot.lane.b32.xlu0 %v958, 64
    %v961 = vpop.permute.xlu0 %960
    %v963 = vadd.f32 %v957, %v961
    %v964 = vtanh.pop %v963
    %v965 = vmul.f32 %v954, %v964
    %v966 = vld [vmem:[#allocation2 + $0x60] sm:$0xff]
    %v967 = vld [vmem:[#allocation2 + $0x68] sm:$0xff]
    %969 = vrot.lane.b32.xlu0 %v965, 64
    %v970 = vpop.permute.xlu0 %969
    %v971 = vsel %vm351, %v970, 0
    %973 = vmatprep.subr.mxu0 %v336
    %974 = vmatpush1.msra.mxu0 %v335
    %975 = vmatprep.subr.mxu0 %v338
    %976 = vmatpush1.msra.mxu0 %v337
    %977 = vmatprep.subr.mxu0 %v340
    %978 = vmatpush1.msra.mxu0 %v339
    %979 = vmatprep.subr.mxu0 %v342
    %980 = vmatpush1.msra.mxu0 %v341
    %981 = vmatprep.subr.mxu0 %v344
    %982 = vmatpush1.msra.mxu0 %v343
    %983 = vmatprep.subr.mxu0 %v346
    %984 = vmatpush1.msra.mxu0 %v345
    %985 = vmatprep.subr.mxu0 %v348
    %986 = vmatpush1.msra.mxu0 %v347
    %987 = vmatprep.subr.mxu0 %v350
    %988 = vmatpush1.msra.mxu0 %v349
    %989 = vmatprep.subr.mxu0 0.0
    %990 = vmatpush1.msra.mxu0 0.0
    %991 = vmatprep.subr.mxu0 0.0
    %992 = vmatpush1.msra.mxu0 0.0
    %993 = vmatprep.subr.mxu0 0.0
    %994 = vmatpush1.msra.mxu0 0.0
    %995 = vmatprep.subr.mxu0 0.0
    %996 = vmatpush1.msra.mxu0 0.0
    %997 = vmatprep.subr.mxu0 0.0
    %998 = vmatpush1.msra.mxu0 0.0
    %999 = vmatprep.subr.mxu0 0.0
    %1000 = vmatpush1.msra.mxu0 0.0
    %1001 = vmatprep.subr.mxu0 0.0
    %1002 = vmatpush1.msra.mxu0 0.0
    %1003 = vmatprep.subr.mxu0 0.0
    %1004 = vmatpush1.msra.mxu0 0.0
    %1005 = vmatprep.subr.mxu0 0.0
    %1006 = vmatpush1.msra.mxu0 0.0
    %1007 = vmatprep.subr.mxu0 0.0
    %1008 = vmatpush1.msra.mxu0 0.0
    %1009 = vmatprep.subr.mxu0 0.0
    %1010 = vmatpush1.msra.mxu0 0.0
    %1011 = vmatprep.subr.mxu0 0.0
    %1012 = vmatpush1.msra.mxu0 0.0
    %1013 = vmatprep.subr.mxu0 0.0
    %1014 = vmatpush1.msra.mxu0 0.0
    %1015 = vmatprep.subr.mxu0 0.0
    %1016 = vmatpush1.msra.mxu0 0.0
    %1017 = vmatprep.subr.mxu0 0.0
    %1018 = vmatpush1.msra.mxu0 0.0
    %1019 = vmatprep.subr.mxu0 0.0
    %1020 = vmatpush1.msra.mxu0 0.0
    %1021 = vmatprep.subr.mxu0 0.0
    %1022 = vmatpush1.msra.mxu0 0.0
    %1023 = vmatprep.subr.mxu0 0.0
    %1024 = vmatpush1.msra.mxu0 0.0
    %1025 = vmatprep.subr.mxu0 0.0
    %1026 = vmatpush1.msra.mxu0 0.0
    %1027 = vmatprep.subr.mxu0 0.0
    %1028 = vmatpush1.msra.mxu0 0.0
    %1029 = vmatprep.subr.mxu0 0.0
    %1030 = vmatpush1.msra.mxu0 0.0
    %1031 = vmatprep.subr.mxu0 0.0
    %1032 = vmatpush1.msra.mxu0 0.0
    %1033 = vmatprep.subr.mxu0 0.0
    %1034 = vmatpush1.msra.mxu0 0.0
    %1035 = vmatprep.subr.mxu0 0.0
    %1036 = vmatpush1.msra.mxu0 0.0
    %1037 = vmatprep.mubr.f32.mxu0 0.0
    %1038 = vmatmul.mubr.f32.gmra.mrb[0].mxu0 %v971
    %v1039 = vpop.f32.mrb[0].mxu0
    %v1040 = vadd.f32 0.0, %v1039
    %v1041 = vpop.f32.mrb[0].mxu0
    %v1042 = vadd.f32 0.0, %v1041
    %1043 = vdwg.mxu0
    %v1044 = vadd.f32 %v966, %v1040
    %v1045 = vadd.f32 %v967, %v1042
    %v1046 = vxor.u32 %v1044, 2147483648
    %v1047 = vxor.u32 %v1045, 2147483648
    %v1048 = vmul.f32 %v1046, 1.442695
    %v1049 = vpow.pop %v1048
    %v1050 = vmul.f32 %v1047, 1.442695
    %v1051 = vpow.pop %v1050
    %v1052 = vadd.f32 %v1049, 1.0
    %v1053 = vadd.f32 %v1051, 1.0
    %v1054 = vrcp.pop %v1052
    %v1055 = vmul.f32 1.0, %v1054
    %v1056 = vrcp.pop %v1053
    %v1057 = vmul.f32 1.0, %v1056
    %v1058 = vmul.f32 %v1057, 2.0
    %v1059 = vsub.f32 %v1058, 1.0
    %v1060 = vmul.f32 %v1055, %v963
    %v1061 = vmul.f32 %v1055, %v1059
    %1063 = vrot.lane.b32.xlu0 %v1061, 64
    %v1064 = vpop.permute.xlu0 %1063
    %v1066 = vadd.f32 %v1060, %v1064
    %v1067 = vtanh.pop %v1066
    %v1068 = vmul.f32 %v1057, %v1067
    %v1069 = vld [vmem:[#allocation2 + $0x70] sm:$0xff]
    %v1070 = vld [vmem:[#allocation2 + $0x78] sm:$0xff]
    %1072 = vrot.lane.b32.xlu0 %v1068, 64
    %v1073 = vpop.permute.xlu0 %1072
    %v1074 = vsel %vm351, %v1073, 0
    %1076 = vmatprep.subr.mxu0 %v336
    %1077 = vmatpush1.msra.mxu0 %v335
    %1078 = vmatprep.subr.mxu0 %v338
    %1079 = vmatpush1.msra.mxu0 %v337
    %1080 = vmatprep.subr.mxu0 %v340
    %1081 = vmatpush1.msra.mxu0 %v339
    %1082 = vmatprep.subr.mxu0 %v342
    %1083 = vmatpush1.msra.mxu0 %v341
    %1084 = vmatprep.subr.mxu0 %v344
    %1085 = vmatpush1.msra.mxu0 %v343
    %1086 = vmatprep.subr.mxu0 %v346
    %1087 = vmatpush1.msra.mxu0 %v345
    %1088 = vmatprep.subr.mxu0 %v348
    %1089 = vmatpush1.msra.mxu0 %v347
    %1090 = vmatprep.subr.mxu0 %v350
    %1091 = vmatpush1.msra.mxu0 %v349
    %1092 = vmatprep.subr.mxu0 0.0
    %1093 = vmatpush1.msra.mxu0 0.0
    %1094 = vmatprep.subr.mxu0 0.0
    %1095 = vmatpush1.msra.mxu0 0.0
    %1096 = vmatprep.subr.mxu0 0.0
    %1097 = vmatpush1.msra.mxu0 0.0
    %1098 = vmatprep.subr.mxu0 0.0
    %1099 = vmatpush1.msra.mxu0 0.0
    %1100 = vmatprep.subr.mxu0 0.0
    %1101 = vmatpush1.msra.mxu0 0.0
    %1102 = vmatprep.subr.mxu0 0.0
    %1103 = vmatpush1.msra.mxu0 0.0
    %1104 = vmatprep.subr.mxu0 0.0
    %1105 = vmatpush1.msra.mxu0 0.0
    %1106 = vmatprep.subr.mxu0 0.0
    %1107 = vmatpush1.msra.mxu0 0.0
    %1108 = vmatprep.subr.mxu0 0.0
    %1109 = vmatpush1.msra.mxu0 0.0
    %1110 = vmatprep.subr.mxu0 0.0
    %1111 = vmatpush1.msra.mxu0 0.0
    %1112 = vmatprep.subr.mxu0 0.0
    %1113 = vmatpush1.msra.mxu0 0.0
    %1114 = vmatprep.subr.mxu0 0.0
    %1115 = vmatpush1.msra.mxu0 0.0
    %1116 = vmatprep.subr.mxu0 0.0
    %1117 = vmatpush1.msra.mxu0 0.0
    %1118 = vmatprep.subr.mxu0 0.0
    %1119 = vmatpush1.msra.mxu0 0.0
    %1120 = vmatprep.subr.mxu0 0.0
    %1121 = vmatpush1.msra.mxu0 0.0
    %1122 = vmatprep.subr.mxu0 0.0
    %1123 = vmatpush1.msra.mxu0 0.0
    %1124 = vmatprep.subr.mxu0 0.0
    %1125 = vmatpush1.msra.mxu0 0.0
    %1126 = vmatprep.subr.mxu0 0.0
    %1127 = vmatpush1.msra.mxu0 0.0
    %1128 = vmatprep.subr.mxu0 0.0
    %1129 = vmatpush1.msra.mxu0 0.0
    %1130 = vmatprep.subr.mxu0 0.0
    %1131 = vmatpush1.msra.mxu0 0.0
    %1132 = vmatprep.subr.mxu0 0.0
    %1133 = vmatpush1.msra.mxu0 0.0
    %1134 = vmatprep.subr.mxu0 0.0
    %1135 = vmatpush1.msra.mxu0 0.0
    %1136 = vmatprep.subr.mxu0 0.0
    %1137 = vmatpush1.msra.mxu0 0.0
    %1138 = vmatprep.subr.mxu0 0.0
    %1139 = vmatpush1.msra.mxu0 0.0
    %1140 = vmatprep.mubr.f32.mxu0 0.0
    %1141 = vmatmul.mubr.f32.gmra.mrb[0].mxu0 %v1074
    %v1142 = vpop.f32.mrb[0].mxu0
    %v1143 = vadd.f32 0.0, %v1142
    %v1144 = vpop.f32.mrb[0].mxu0
    %v1145 = vadd.f32 0.0, %v1144
    %1146 = vdwg.mxu0
    %v1147 = vadd.f32 %v1069, %v1143
    %v1148 = vadd.f32 %v1070, %v1145
    %v1149 = vxor.u32 %v1147, 2147483648
    %v1150 = vxor.u32 %v1148, 2147483648
    %v1151 = vmul.f32 %v1149, 1.442695
    %v1152 = vpow.pop %v1151
    %v1153 = vmul.f32 %v1150, 1.442695
    %v1154 = vpow.pop %v1153
    %v1155 = vadd.f32 %v1152, 1.0
    %v1156 = vadd.f32 %v1154, 1.0
    %v1157 = vrcp.pop %v1155
    %v1158 = vmul.f32 1.0, %v1157
    %v1159 = vrcp.pop %v1156
    %v1160 = vmul.f32 1.0, %v1159
    %v1161 = vmul.f32 %v1160, 2.0
    %v1162 = vsub.f32 %v1161, 1.0
    %v1163 = vmul.f32 %v1158, %v1066
    %v1164 = vmul.f32 %v1158, %v1162
    %1166 = vrot.lane.b32.xlu0 %v1164, 64
    %v1167 = vpop.permute.xlu0 %1166
    %v1169 = vadd.f32 %v1163, %v1167
    %v1170 = vtanh.pop %v1169
    %v1171 = vmul.f32 %v1160, %v1170
    %v1172 = vld [vmem:[#allocation2 + $0x80] sm:$0xff]
    %v1173 = vld [vmem:[#allocation2 + $0x88] sm:$0xff]
    %1175 = vrot.lane.b32.xlu0 %v1171, 64
    %v1176 = vpop.permute.xlu0 %1175
    %v1177 = vsel %vm351, %v1176, 0
    %1179 = vmatprep.subr.mxu0 %v336
    %1180 = vmatpush1.msra.mxu0 %v335
    %1181 = vmatprep.subr.mxu0 %v338
    %1182 = vmatpush1.msra.mxu0 %v337
    %1183 = vmatprep.subr.mxu0 %v340
    %1184 = vmatpush1.msra.mxu0 %v339
    %1185 = vmatprep.subr.mxu0 %v342
    %1186 = vmatpush1.msra.mxu0 %v341
    %1187 = vmatprep.subr.mxu0 %v344
    %1188 = vmatpush1.msra.mxu0 %v343
    %1189 = vmatprep.subr.mxu0 %v346
    %1190 = vmatpush1.msra.mxu0 %v345
    %1191 = vmatprep.subr.mxu0 %v348
    %1192 = vmatpush1.msra.mxu0 %v347
    %1193 = vmatprep.subr.mxu0 %v350
    %1194 = vmatpush1.msra.mxu0 %v349
    %1195 = vmatprep.subr.mxu0 0.0
    %1196 = vmatpush1.msra.mxu0 0.0
    %1197 = vmatprep.subr.mxu0 0.0
    %1198 = vmatpush1.msra.mxu0 0.0
    %1199 = vmatprep.subr.mxu0 0.0
    %1200 = vmatpush1.msra.mxu0 0.0
    %1201 = vmatprep.subr.mxu0 0.0
    %1202 = vmatpush1.msra.mxu0 0.0
    %1203 = vmatprep.subr.mxu0 0.0
    %1204 = vmatpush1.msra.mxu0 0.0
    %1205 = vmatprep.subr.mxu0 0.0
    %1206 = vmatpush1.msra.mxu0 0.0
    %1207 = vmatprep.subr.mxu0 0.0
    %1208 = vmatpush1.msra.mxu0 0.0
    %1209 = vmatprep.subr.mxu0 0.0
    %1210 = vmatpush1.msra.mxu0 0.0
    %1211 = vmatprep.subr.mxu0 0.0
    %1212 = vmatpush1.msra.mxu0 0.0
    %1213 = vmatprep.subr.mxu0 0.0
    %1214 = vmatpush1.msra.mxu0 0.0
    %1215 = vmatprep.subr.mxu0 0.0
    %1216 = vmatpush1.msra.mxu0 0.0
    %1217 = vmatprep.subr.mxu0 0.0
    %1218 = vmatpush1.msra.mxu0 0.0
    %1219 = vmatprep.subr.mxu0 0.0
    %1220 = vmatpush1.msra.mxu0 0.0
    %1221 = vmatprep.subr.mxu0 0.0
    %1222 = vmatpush1.msra.mxu0 0.0
    %1223 = vmatprep.subr.mxu0 0.0
    %1224 = vmatpush1.msra.mxu0 0.0
    %1225 = vmatprep.subr.mxu0 0.0
    %1226 = vmatpush1.msra.mxu0 0.0
    %1227 = vmatprep.subr.mxu0 0.0
    %1228 = vmatpush1.msra.mxu0 0.0
    %1229 = vmatprep.subr.mxu0 0.0
    %1230 = vmatpush1.msra.mxu0 0.0
    %1231 = vmatprep.subr.mxu0 0.0
    %1232 = vmatpush1.msra.mxu0 0.0
    %1233 = vmatprep.subr.mxu0 0.0
    %1234 = vmatpush1.msra.mxu0 0.0
    %1235 = vmatprep.subr.mxu0 0.0
    %1236 = vmatpush1.msra.mxu0 0.0
    %1237 = vmatprep.subr.mxu0 0.0
    %1238 = vmatpush1.msra.mxu0 0.0
    %1239 = vmatprep.subr.mxu0 0.0
    %1240 = vmatpush1.msra.mxu0 0.0
    %1241 = vmatprep.subr.mxu0 0.0
    %1242 = vmatpush1.msra.mxu0 0.0
    %1243 = vmatprep.mubr.f32.mxu0 0.0
    %1244 = vmatmul.mubr.f32.gmra.mrb[0].mxu0 %v1177
    %v1245 = vpop.f32.mrb[0].mxu0
    %v1246 = vadd.f32 0.0, %v1245
    %v1247 = vpop.f32.mrb[0].mxu0
    %v1248 = vadd.f32 0.0, %v1247
    %1249 = vdwg.mxu0
    %v1250 = vadd.f32 %v1172, %v1246
    %v1251 = vadd.f32 %v1173, %v1248
    %v1252 = vxor.u32 %v1250, 2147483648
    %v1253 = vxor.u32 %v1251, 2147483648
    %v1254 = vmul.f32 %v1252, 1.442695
    %v1255 = vpow.pop %v1254
    %v1256 = vmul.f32 %v1253, 1.442695
    %v1257 = vpow.pop %v1256
    %v1258 = vadd.f32 %v1255, 1.0
    %v1259 = vadd.f32 %v1257, 1.0
    %v1260 = vrcp.pop %v1258
    %v1261 = vmul.f32 1.0, %v1260
    %v1262 = vrcp.pop %v1259
    %v1263 = vmul.f32 1.0, %v1262
    %v1264 = vmul.f32 %v1263, 2.0
    %v1265 = vsub.f32 %v1264, 1.0
    %v1266 = vmul.f32 %v1261, %v1169
    %v1267 = vmul.f32 %v1261, %v1265
    %1269 = vrot.lane.b32.xlu0 %v1267, 64
    %v1270 = vpop.permute.xlu0 %1269
    %v1272 = vadd.f32 %v1266, %v1270
    %v1273 = vtanh.pop %v1272
    %v1274 = vmul.f32 %v1263, %v1273
    %v1275 = vld [vmem:[#allocation2 + $0x90] sm:$0xff]
    %v1276 = vld [vmem:[#allocation2 + $0x98] sm:$0xff]
    %1278 = vrot.lane.b32.xlu0 %v1274, 64
    %v1279 = vpop.permute.xlu0 %1278
    %v1280 = vsel %vm351, %v1279, 0
    %1282 = vmatprep.subr.mxu0 %v336
    %1283 = vmatpush1.msra.mxu0 %v335
    %1284 = vmatprep.subr.mxu0 %v338
    %1285 = vmatpush1.msra.mxu0 %v337
    %1286 = vmatprep.subr.mxu0 %v340
    %1287 = vmatpush1.msra.mxu0 %v339
    %1288 = vmatprep.subr.mxu0 %v342
    %1289 = vmatpush1.msra.mxu0 %v341
    %1290 = vmatprep.subr.mxu0 %v344
    %1291 = vmatpush1.msra.mxu0 %v343
    %1292 = vmatprep.subr.mxu0 %v346
    %1293 = vmatpush1.msra.mxu0 %v345
    %1294 = vmatprep.subr.mxu0 %v348
    %1295 = vmatpush1.msra.mxu0 %v347
    %1296 = vmatprep.subr.mxu0 %v350
    %1297 = vmatpush1.msra.mxu0 %v349
    %1298 = vmatprep.subr.mxu0 0.0
    %1299 = vmatpush1.msra.mxu0 0.0
    %1300 = vmatprep.subr.mxu0 0.0
    %1301 = vmatpush1.msra.mxu0 0.0
    %1302 = vmatprep.subr.mxu0 0.0
    %1303 = vmatpush1.msra.mxu0 0.0
    %1304 = vmatprep.subr.mxu0 0.0
    %1305 = vmatpush1.msra.mxu0 0.0
    %1306 = vmatprep.subr.mxu0 0.0
    %1307 = vmatpush1.msra.mxu0 0.0
    %1308 = vmatprep.subr.mxu0 0.0
    %1309 = vmatpush1.msra.mxu0 0.0
    %1310 = vmatprep.subr.mxu0 0.0
    %1311 = vmatpush1.msra.mxu0 0.0
    %1312 = vmatprep.subr.mxu0 0.0
    %1313 = vmatpush1.msra.mxu0 0.0
    %1314 = vmatprep.subr.mxu0 0.0
    %1315 = vmatpush1.msra.mxu0 0.0
    %1316 = vmatprep.subr.mxu0 0.0
    %1317 = vmatpush1.msra.mxu0 0.0
    %1318 = vmatprep.subr.mxu0 0.0
    %1319 = vmatpush1.msra.mxu0 0.0
    %1320 = vmatprep.subr.mxu0 0.0
    %1321 = vmatpush1.msra.mxu0 0.0
    %1322 = vmatprep.subr.mxu0 0.0
    %1323 = vmatpush1.msra.mxu0 0.0
    %1324 = vmatprep.subr.mxu0 0.0
    %1325 = vmatpush1.msra.mxu0 0.0
    %1326 = vmatprep.subr.mxu0 0.0
    %1327 = vmatpush1.msra.mxu0 0.0
    %1328 = vmatprep.subr.mxu0 0.0
    %1329 = vmatpush1.msra.mxu0 0.0
    %1330 = vmatprep.subr.mxu0 0.0
    %1331 = vmatpush1.msra.mxu0 0.0
    %1332 = vmatprep.subr.mxu0 0.0
    %1333 = vmatpush1.msra.mxu0 0.0
    %1334 = vmatprep.subr.mxu0 0.0
    %1335 = vmatpush1.msra.mxu0 0.0
    %1336 = vmatprep.subr.mxu0 0.0
    %1337 = vmatpush1.msra.mxu0 0.0
    %1338 = vmatprep.subr.mxu0 0.0
    %1339 = vmatpush1.msra.mxu0 0.0
    %1340 = vmatprep.subr.mxu0 0.0
    %1341 = vmatpush1.msra.mxu0 0.0
    %1342 = vmatprep.subr.mxu0 0.0
    %1343 = vmatpush1.msra.mxu0 0.0
    %1344 = vmatprep.subr.mxu0 0.0
    %1345 = vmatpush1.msra.mxu0 0.0
    %1346 = vmatprep.mubr.f32.mxu0 0.0
    %1347 = vmatmul.mubr.f32.gmra.mrb[0].mxu0 %v1280
    %v1348 = vpop.f32.mrb[0].mxu0
    %v1349 = vadd.f32 0.0, %v1348
    %v1350 = vpop.f32.mrb[0].mxu0
    %v1351 = vadd.f32 0.0, %v1350
    %1352 = vdwg.mxu0
    %v1353 = vadd.f32 %v1275, %v1349
    %v1354 = vadd.f32 %v1276, %v1351
    %v1355 = vxor.u32 %v1353, 2147483648
    %v1356 = vxor.u32 %v1354, 2147483648
    %v1357 = vmul.f32 %v1355, 1.442695
    %v1358 = vpow.pop %v1357
    %v1359 = vmul.f32 %v1356, 1.442695
    %v1360 = vpow.pop %v1359
    %v1361 = vadd.f32 %v1358, 1.0
    %v1362 = vadd.f32 %v1360, 1.0
    %v1363 = vrcp.pop %v1361
    %v1364 = vmul.f32 1.0, %v1363
    %v1365 = vrcp.pop %v1362
    %v1366 = vmul.f32 1.0, %v1365
    %v1367 = vmul.f32 %v1366, 2.0
    %v1368 = vsub.f32 %v1367, 1.0
    %v1369 = vmul.f32 %v1364, %v1272
    %v1370 = vmul.f32 %v1364, %v1368
    %1372 = vrot.lane.b32.xlu0 %v1370, 64
    %v1373 = vpop.permute.xlu0 %1372
    %v1375 = vadd.f32 %v1369, %v1373
    %v1376 = vtanh.pop %v1375
    %v1377 = vmul.f32 %v1366, %v1376
    %1379 = vrot.lane.b32.xlu0 %v1377, 64
    %v1380 = vpop.permute.xlu0 %1379
    %1382 = vst.msk [vmem:[#allocation3] sm:$0xff] %vm351, %v1380
    %v1383 = vld [vmem:[#allocation2 + $0xa0] sm:$0xff]
    %v1384 = vld [vmem:[#allocation2 + $0xa8] sm:$0xff]
    %v1385 = vld [vmem:[#allocation10] sm:$0xff]
    %v1386 = vld [vmem:[#allocation10 + $0x8] sm:$0xff]
    %v1387 = vld [vmem:[#allocation10 + $0x10] sm:$0xff]
    %v1388 = vld [vmem:[#allocation10 + $0x18] sm:$0xff]
    %v1389 = vld [vmem:[#allocation10 + $0x20] sm:$0xff]
    %v1390 = vld [vmem:[#allocation10 + $0x28] sm:$0xff]
    %v1391 = vld [vmem:[#allocation10 + $0x30] sm:$0xff]
    %v1392 = vld [vmem:[#allocation10 + $0x38] sm:$0xff]
    %v1393 = vld [vmem:[#allocation10 + $0x40] sm:$0xff]
    %v1394 = vld [vmem:[#allocation10 + $0x48] sm:$0xff]
    %v1395 = vld [vmem:[#allocation10 + $0x50] sm:$0xff]
    %v1396 = vld [vmem:[#allocation10 + $0x58] sm:$0xff]
    %v1397 = vld [vmem:[#allocation10 + $0x60] sm:$0xff]
    %v1398 = vld [vmem:[#allocation10 + $0x68] sm:$0xff]
    %v1399 = vld [vmem:[#allocation10 + $0x70] sm:$0xff]
    %v1400 = vld [vmem:[#allocation10 + $0x78] sm:$0xff]
    %v1401 = vsel %vm351, %v1380, 0
    %1403 = vmatprep.subr.mxu0 %v1386
    %1404 = vmatpush1.msra.mxu0 %v1385
    %1405 = vmatprep.subr.mxu0 %v1388
    %1406 = vmatpush1.msra.mxu0 %v1387
    %1407 = vmatprep.subr.mxu0 %v1390
    %1408 = vmatpush1.msra.mxu0 %v1389
    %1409 = vmatprep.subr.mxu0 %v1392
    %1410 = vmatpush1.msra.mxu0 %v1391
    %1411 = vmatprep.subr.mxu0 %v1394
    %1412 = vmatpush1.msra.mxu0 %v1393
    %1413 = vmatprep.subr.mxu0 %v1396
    %1414 = vmatpush1.msra.mxu0 %v1395
    %1415 = vmatprep.subr.mxu0 %v1398
    %1416 = vmatpush1.msra.mxu0 %v1397
    %1417 = vmatprep.subr.mxu0 %v1400
    %1418 = vmatpush1.msra.mxu0 %v1399
    %1419 = vmatprep.subr.mxu0 0.0
    %1420 = vmatpush1.msra.mxu0 0.0
    %1421 = vmatprep.subr.mxu0 0.0
    %1422 = vmatpush1.msra.mxu0 0.0
    %1423 = vmatprep.subr.mxu0 0.0
    %1424 = vmatpush1.msra.mxu0 0.0
    %1425 = vmatprep.subr.mxu0 0.0
    %1426 = vmatpush1.msra.mxu0 0.0
    %1427 = vmatprep.subr.mxu0 0.0
    %1428 = vmatpush1.msra.mxu0 0.0
    %1429 = vmatprep.subr.mxu0 0.0
    %1430 = vmatpush1.msra.mxu0 0.0
    %1431 = vmatprep.subr.mxu0 0.0
    %1432 = vmatpush1.msra.mxu0 0.0
    %1433 = vmatprep.subr.mxu0 0.0
    %1434 = vmatpush1.msra.mxu0 0.0
    %1435 = vmatprep.subr.mxu0 0.0
    %1436 = vmatpush1.msra.mxu0 0.0
    %1437 = vmatprep.subr.mxu0 0.0
    %1438 = vmatpush1.msra.mxu0 0.0
    %1439 = vmatprep.subr.mxu0 0.0
    %1440 = vmatpush1.msra.mxu0 0.0
    %1441 = vmatprep.subr.mxu0 0.0
    %1442 = vmatpush1.msra.mxu0 0.0
    %1443 = vmatprep.subr.mxu0 0.0
    %1444 = vmatpush1.msra.mxu0 0.0
    %1445 = vmatprep.subr.mxu0 0.0
    %1446 = vmatpush1.msra.mxu0 0.0
    %1447 = vmatprep.subr.mxu0 0.0
    %1448 = vmatpush1.msra.mxu0 0.0
    %1449 = vmatprep.subr.mxu0 0.0
    %1450 = vmatpush1.msra.mxu0 0.0
    %1451 = vmatprep.subr.mxu0 0.0
    %1452 = vmatpush1.msra.mxu0 0.0
    %1453 = vmatprep.subr.mxu0 0.0
    %1454 = vmatpush1.msra.mxu0 0.0
    %1455 = vmatprep.subr.mxu0 0.0
    %1456 = vmatpush1.msra.mxu0 0.0
    %1457 = vmatprep.subr.mxu0 0.0
    %1458 = vmatpush1.msra.mxu0 0.0
    %1459 = vmatprep.subr.mxu0 0.0
    %1460 = vmatpush1.msra.mxu0 0.0
    %1461 = vmatprep.subr.mxu0 0.0
    %1462 = vmatpush1.msra.mxu0 0.0
    %1463 = vmatprep.subr.mxu0 0.0
    %1464 = vmatpush1.msra.mxu0 0.0
    %1465 = vmatprep.subr.mxu0 0.0
    %1466 = vmatpush1.msra.mxu0 0.0
    %1467 = vmatprep.mubr.f32.mxu0 0.0
    %1468 = vmatmul.mubr.f32.gmra.mrb[0].mxu0 %v1401
    %v1469 = vpop.f32.mrb[0].mxu0
    %v1470 = vadd.f32 0.0, %v1469
    %v1471 = vpop.f32.mrb[0].mxu0
    %v1472 = vadd.f32 0.0, %v1471
    %1473 = vdwg.mxu0
    %v1474 = vadd.f32 %v1383, %v1470
    %v1475 = vadd.f32 %v1384, %v1472
    %v1476 = vxor.u32 %v1474, 2147483648
    %v1477 = vxor.u32 %v1475, 2147483648
    %v1478 = vmul.f32 %v1476, 1.442695
    %v1479 = vpow.pop %v1478
    %v1480 = vmul.f32 %v1477, 1.442695
    %v1481 = vpow.pop %v1480
    %v1482 = vadd.f32 %v1479, 1.0
    %v1483 = vadd.f32 %v1481, 1.0
    %v1484 = vrcp.pop %v1482
    %v1485 = vmul.f32 1.0, %v1484
    %v1486 = vrcp.pop %v1483
    %v1487 = vmul.f32 1.0, %v1486
    %v1488 = vmul.f32 %v1487, 2.0
    %v1489 = vsub.f32 %v1488, 1.0
    %v1490 = vmul.f32 %v1485, %v1375
    %v1491 = vmul.f32 %v1485, %v1489
    %1493 = vrot.lane.b32.xlu0 %v1491, 64
    %v1494 = vpop.permute.xlu0 %1493
    %v1496 = vadd.f32 %v1490, %v1494
    %v1497 = vtanh.pop %v1496
    %v1498 = vmul.f32 %v1487, %v1497
    %1500 = vrot.lane.b32.xlu0 %v1498, 64
    %v1501 = vpop.permute.xlu0 %1500
    %1503 = vst.msk [vmem:[#allocation3 + $0x8] sm:$0xff] %vm351, %v1501
    %v1504 = vld [vmem:[#allocation2 + $0xb0] sm:$0xff]
    %v1505 = vld [vmem:[#allocation2 + $0xb8] sm:$0xff]
    %v1506 = vld [vmem:[#allocation10] sm:$0xff]
    %v1507 = vld [vmem:[#allocation10 + $0x8] sm:$0xff]
    %v1508 = vld [vmem:[#allocation10 + $0x10] sm:$0xff]
    %v1509 = vld [vmem:[#allocation10 + $0x18] sm:$0xff]
    %v1510 = vld [vmem:[#allocation10 + $0x20] sm:$0xff]
    %v1511 = vld [vmem:[#allocation10 + $0x28] sm:$0xff]
    %v1512 = vld [vmem:[#allocation10 + $0x30] sm:$0xff]
    %v1513 = vld [vmem:[#allocation10 + $0x38] sm:$0xff]
    %v1514 = vld [vmem:[#allocation10 + $0x40] sm:$0xff]
    %v1515 = vld [vmem:[#allocation10 + $0x48] sm:$0xff]
    %v1516 = vld [vmem:[#allocation10 + $0x50] sm:$0xff]
    %v1517 = vld [vmem:[#allocation10 + $0x58] sm:$0xff]
    %v1518 = vld [vmem:[#allocation10 + $0x60] sm:$0xff]
    %v1519 = vld [vmem:[#allocation10 + $0x68] sm:$0xff]
    %v1520 = vld [vmem:[#allocation10 + $0x70] sm:$0xff]
    %v1521 = vld [vmem:[#allocation10 + $0x78] sm:$0xff]
    %v1522 = vsel %vm351, %v1501, 0
    %1524 = vmatprep.subr.mxu0 %v1507
    %1525 = vmatpush1.msra.mxu0 %v1506
    %1526 = vmatprep.subr.mxu0 %v1509
    %1527 = vmatpush1.msra.mxu0 %v1508
    %1528 = vmatprep.subr.mxu0 %v1511
    %1529 = vmatpush1.msra.mxu0 %v1510
    %1530 = vmatprep.subr.mxu0 %v1513
    %1531 = vmatpush1.msra.mxu0 %v1512
    %1532 = vmatprep.subr.mxu0 %v1515
    %1533 = vmatpush1.msra.mxu0 %v1514
    %1534 = vmatprep.subr.mxu0 %v1517
    %1535 = vmatpush1.msra.mxu0 %v1516
    %1536 = vmatprep.subr.mxu0 %v1519
    %1537 = vmatpush1.msra.mxu0 %v1518
    %1538 = vmatprep.subr.mxu0 %v1521
    %1539 = vmatpush1.msra.mxu0 %v1520
    %1540 = vmatprep.subr.mxu0 0.0
    %1541 = vmatpush1.msra.mxu0 0.0
    %1542 = vmatprep.subr.mxu0 0.0
    %1543 = vmatpush1.msra.mxu0 0.0
    %1544 = vmatprep.subr.mxu0 0.0
    %1545 = vmatpush1.msra.mxu0 0.0
    %1546 = vmatprep.subr.mxu0 0.0
    %1547 = vmatpush1.msra.mxu0 0.0
    %1548 = vmatprep.subr.mxu0 0.0
    %1549 = vmatpush1.msra.mxu0 0.0
    %1550 = vmatprep.subr.mxu0 0.0
    %1551 = vmatpush1.msra.mxu0 0.0
    %1552 = vmatprep.subr.mxu0 0.0
    %1553 = vmatpush1.msra.mxu0 0.0
    %1554 = vmatprep.subr.mxu0 0.0
    %1555 = vmatpush1.msra.mxu0 0.0
    %1556 = vmatprep.subr.mxu0 0.0
    %1557 = vmatpush1.msra.mxu0 0.0
    %1558 = vmatprep.subr.mxu0 0.0
    %1559 = vmatpush1.msra.mxu0 0.0
    %1560 = vmatprep.subr.mxu0 0.0
    %1561 = vmatpush1.msra.mxu0 0.0
    %1562 = vmatprep.subr.mxu0 0.0
    %1563 = vmatpush1.msra.mxu0 0.0
    %1564 = vmatprep.subr.mxu0 0.0
    %1565 = vmatpush1.msra.mxu0 0.0
    %1566 = vmatprep.subr.mxu0 0.0
    %1567 = vmatpush1.msra.mxu0 0.0
    %1568 = vmatprep.subr.mxu0 0.0
    %1569 = vmatpush1.msra.mxu0 0.0
    %1570 = vmatprep.subr.mxu0 0.0
    %1571 = vmatpush1.msra.mxu0 0.0
    %1572 = vmatprep.subr.mxu0 0.0
    %1573 = vmatpush1.msra.mxu0 0.0
    %1574 = vmatprep.subr.mxu0 0.0
    %1575 = vmatpush1.msra.mxu0 0.0
    %1576 = vmatprep.subr.mxu0 0.0
    %1577 = vmatpush1.msra.mxu0 0.0
    %1578 = vmatprep.subr.mxu0 0.0
    %1579 = vmatpush1.msra.mxu0 0.0
    %1580 = vmatprep.subr.mxu0 0.0
    %1581 = vmatpush1.msra.mxu0 0.0
    %1582 = vmatprep.subr.mxu0 0.0
    %1583 = vmatpush1.msra.mxu0 0.0
    %1584 = vmatprep.subr.mxu0 0.0
    %1585 = vmatpush1.msra.mxu0 0.0
    %1586 = vmatprep.subr.mxu0 0.0
    %1587 = vmatpush1.msra.mxu0 0.0
    %1588 = vmatprep.mubr.f32.mxu0 0.0
    %1589 = vmatmul.mubr.f32.gmra.mrb[0].mxu0 %v1522
    %v1590 = vpop.f32.mrb[0].mxu0
    %v1591 = vadd.f32 0.0, %v1590
    %v1592 = vpop.f32.mrb[0].mxu0
    %v1593 = vadd.f32 0.0, %v1592
    %1594 = vdwg.mxu0
    %v1595 = vadd.f32 %v1504, %v1591
    %v1596 = vadd.f32 %v1505, %v1593
    %v1597 = vxor.u32 %v1595, 2147483648
    %v1598 = vxor.u32 %v1596, 2147483648
    %v1599 = vmul.f32 %v1597, 1.442695
    %v1600 = vpow.pop %v1599
    %v1601 = vmul.f32 %v1598, 1.442695
    %v1602 = vpow.pop %v1601
    %v1603 = vadd.f32 %v1600, 1.0
    %v1604 = vadd.f32 %v1602, 1.0
    %v1605 = vrcp.pop %v1603
    %v1606 = vmul.f32 1.0, %v1605
    %v1607 = vrcp.pop %v1604
    %v1608 = vmul.f32 1.0, %v1607
    %v1609 = vmul.f32 %v1608, 2.0
    %v1610 = vsub.f32 %v1609, 1.0
    %v1611 = vmul.f32 %v1606, %v1496
    %v1612 = vmul.f32 %v1606, %v1610
    %1614 = vrot.lane.b32.xlu0 %v1612, 64
    %v1615 = vpop.permute.xlu0 %1614
    %v1617 = vadd.f32 %v1611, %v1615
    %v1618 = vtanh.pop %v1617
    %v1619 = vmul.f32 %v1608, %v1618
    %1621 = vrot.lane.b32.xlu0 %v1619, 64
    %v1622 = vpop.permute.xlu0 %1621
    %1624 = vst.msk [vmem:[#allocation3 + $0x10] sm:$0xff] %vm351, %v1622
    %v1625 = vld [vmem:[#allocation2 + $0xc0] sm:$0xff]
    %v1626 = vld [vmem:[#allocation2 + $0xc8] sm:$0xff]
    %v1627 = vld [vmem:[#allocation10] sm:$0xff]
    %v1628 = vld [vmem:[#allocation10 + $0x8] sm:$0xff]
    %v1629 = vld [vmem:[#allocation10 + $0x10] sm:$0xff]
    %v1630 = vld [vmem:[#allocation10 + $0x18] sm:$0xff]
    %v1631 = vld [vmem:[#allocation10 + $0x20] sm:$0xff]
    %v1632 = vld [vmem:[#allocation10 + $0x28] sm:$0xff]
    %v1633 = vld [vmem:[#allocation10 + $0x30] sm:$0xff]
    %v1634 = vld [vmem:[#allocation10 + $0x38] sm:$0xff]
    %v1635 = vld [vmem:[#allocation10 + $0x40] sm:$0xff]
    %v1636 = vld [vmem:[#allocation10 + $0x48] sm:$0xff]
    %v1637 = vld [vmem:[#allocation10 + $0x50] sm:$0xff]
    %v1638 = vld [vmem:[#allocation10 + $0x58] sm:$0xff]
    %v1639 = vld [vmem:[#allocation10 + $0x60] sm:$0xff]
    %v1640 = vld [vmem:[#allocation10 + $0x68] sm:$0xff]
    %v1641 = vld [vmem:[#allocation10 + $0x70] sm:$0xff]
    %v1642 = vld [vmem:[#allocation10 + $0x78] sm:$0xff]
    %v1643 = vsel %vm351, %v1622, 0
    %1645 = vmatprep.subr.mxu0 %v1628
    %1646 = vmatpush1.msra.mxu0 %v1627
    %1647 = vmatprep.subr.mxu0 %v1630
    %1648 = vmatpush1.msra.mxu0 %v1629
    %1649 = vmatprep.subr.mxu0 %v1632
    %1650 = vmatpush1.msra.mxu0 %v1631
    %1651 = vmatprep.subr.mxu0 %v1634
    %1652 = vmatpush1.msra.mxu0 %v1633
    %1653 = vmatprep.subr.mxu0 %v1636
    %1654 = vmatpush1.msra.mxu0 %v1635
    %1655 = vmatprep.subr.mxu0 %v1638
    %1656 = vmatpush1.msra.mxu0 %v1637
    %1657 = vmatprep.subr.mxu0 %v1640
    %1658 = vmatpush1.msra.mxu0 %v1639
    %1659 = vmatprep.subr.mxu0 %v1642
    %1660 = vmatpush1.msra.mxu0 %v1641
    %1661 = vmatprep.subr.mxu0 0.0
    %1662 = vmatpush1.msra.mxu0 0.0
    %1663 = vmatprep.subr.mxu0 0.0
    %1664 = vmatpush1.msra.mxu0 0.0
    %1665 = vmatprep.subr.mxu0 0.0
    %1666 = vmatpush1.msra.mxu0 0.0
    %1667 = vmatprep.subr.mxu0 0.0
    %1668 = vmatpush1.msra.mxu0 0.0
    %1669 = vmatprep.subr.mxu0 0.0
    %1670 = vmatpush1.msra.mxu0 0.0
    %1671 = vmatprep.subr.mxu0 0.0
    %1672 = vmatpush1.msra.mxu0 0.0
    %1673 = vmatprep.subr.mxu0 0.0
    %1674 = vmatpush1.msra.mxu0 0.0
    %1675 = vmatprep.subr.mxu0 0.0
    %1676 = vmatpush1.msra.mxu0 0.0
    %1677 = vmatprep.subr.mxu0 0.0
    %1678 = vmatpush1.msra.mxu0 0.0
    %1679 = vmatprep.subr.mxu0 0.0
    %1680 = vmatpush1.msra.mxu0 0.0
    %1681 = vmatprep.subr.mxu0 0.0
    %1682 = vmatpush1.msra.mxu0 0.0
    %1683 = vmatprep.subr.mxu0 0.0
    %1684 = vmatpush1.msra.mxu0 0.0
    %1685 = vmatprep.subr.mxu0 0.0
    %1686 = vmatpush1.msra.mxu0 0.0
    %1687 = vmatprep.subr.mxu0 0.0
    %1688 = vmatpush1.msra.mxu0 0.0
    %1689 = vmatprep.subr.mxu0 0.0
    %1690 = vmatpush1.msra.mxu0 0.0
    %1691 = vmatprep.subr.mxu0 0.0
    %1692 = vmatpush1.msra.mxu0 0.0
    %1693 = vmatprep.subr.mxu0 0.0
    %1694 = vmatpush1.msra.mxu0 0.0
    %1695 = vmatprep.subr.mxu0 0.0
    %1696 = vmatpush1.msra.mxu0 0.0
    %1697 = vmatprep.subr.mxu0 0.0
    %1698 = vmatpush1.msra.mxu0 0.0
    %1699 = vmatprep.subr.mxu0 0.0
    %1700 = vmatpush1.msra.mxu0 0.0
    %1701 = vmatprep.subr.mxu0 0.0
    %1702 = vmatpush1.msra.mxu0 0.0
    %1703 = vmatprep.subr.mxu0 0.0
    %1704 = vmatpush1.msra.mxu0 0.0
    %1705 = vmatprep.subr.mxu0 0.0
    %1706 = vmatpush1.msra.mxu0 0.0
    %1707 = vmatprep.subr.mxu0 0.0
    %1708 = vmatpush1.msra.mxu0 0.0
    %1709 = vmatprep.mubr.f32.mxu0 0.0
    %1710 = vmatmul.mubr.f32.gmra.mrb[0].mxu0 %v1643
    %v1711 = vpop.f32.mrb[0].mxu0
    %v1712 = vadd.f32 0.0, %v1711
    %v1713 = vpop.f32.mrb[0].mxu0
    %v1714 = vadd.f32 0.0, %v1713
    %1715 = vdwg.mxu0
    %v1716 = vadd.f32 %v1625, %v1712
    %v1717 = vadd.f32 %v1626, %v1714
    %v1718 = vxor.u32 %v1716, 2147483648
    %v1719 = vxor.u32 %v1717, 2147483648
    %v1720 = vmul.f32 %v1718, 1.442695
    %v1721 = vpow.pop %v1720
    %v1722 = vmul.f32 %v1719, 1.442695
    %v1723 = vpow.pop %v1722
    %v1724 = vadd.f32 %v1721, 1.0
    %v1725 = vadd.f32 %v1723, 1.0
    %v1726 = vrcp.pop %v1724
    %v1727 = vmul.f32 1.0, %v1726
    %v1728 = vrcp.pop %v1725
    %v1729 = vmul.f32 1.0, %v1728
    %v1730 = vmul.f32 %v1729, 2.0
    %v1731 = vsub.f32 %v1730, 1.0
    %v1732 = vmul.f32 %v1727, %v1617
    %v1733 = vmul.f32 %v1727, %v1731
    %1735 = vrot.lane.b32.xlu0 %v1733, 64
    %v1736 = vpop.permute.xlu0 %1735
    %v1738 = vadd.f32 %v1732, %v1736
    %v1739 = vtanh.pop %v1738
    %v1740 = vmul.f32 %v1729, %v1739
    %1742 = vrot.lane.b32.xlu0 %v1740, 64
    %v1743 = vpop.permute.xlu0 %1742
    %1745 = vst.msk [vmem:[#allocation3 + $0x18] sm:$0xff] %vm351, %v1743
    %v1746 = vld [vmem:[#allocation2 + $0xd0] sm:$0xff]
    %v1747 = vld [vmem:[#allocation2 + $0xd8] sm:$0xff]
    %v1748 = vld [vmem:[#allocation10] sm:$0xff]
    %v1749 = vld [vmem:[#allocation10 + $0x8] sm:$0xff]
    %v1750 = vld [vmem:[#allocation10 + $0x10] sm:$0xff]
    %v1751 = vld [vmem:[#allocation10 + $0x18] sm:$0xff]
    %v1752 = vld [vmem:[#allocation10 + $0x20] sm:$0xff]
    %v1753 = vld [vmem:[#allocation10 + $0x28] sm:$0xff]
    %v1754 = vld [vmem:[#allocation10 + $0x30] sm:$0xff]
    %v1755 = vld [vmem:[#allocation10 + $0x38] sm:$0xff]
    %v1756 = vld [vmem:[#allocation10 + $0x40] sm:$0xff]
    %v1757 = vld [vmem:[#allocation10 + $0x48] sm:$0xff]
    %v1758 = vld [vmem:[#allocation10 + $0x50] sm:$0xff]
    %v1759 = vld [vmem:[#allocation10 + $0x58] sm:$0xff]
    %v1760 = vld [vmem:[#allocation10 + $0x60] sm:$0xff]
    %v1761 = vld [vmem:[#allocation10 + $0x68] sm:$0xff]
    %v1762 = vld [vmem:[#allocation10 + $0x70] sm:$0xff]
    %v1763 = vld [vmem:[#allocation10 + $0x78] sm:$0xff]
    %v1764 = vsel %vm351, %v1743, 0
    %1766 = vmatprep.subr.mxu0 %v1749
    %1767 = vmatpush1.msra.mxu0 %v1748
    %1768 = vmatprep.subr.mxu0 %v1751
    %1769 = vmatpush1.msra.mxu0 %v1750
    %1770 = vmatprep.subr.mxu0 %v1753
    %1771 = vmatpush1.msra.mxu0 %v1752
    %1772 = vmatprep.subr.mxu0 %v1755
    %1773 = vmatpush1.msra.mxu0 %v1754
    %1774 = vmatprep.subr.mxu0 %v1757
    %1775 = vmatpush1.msra.mxu0 %v1756
    %1776 = vmatprep.subr.mxu0 %v1759
    %1777 = vmatpush1.msra.mxu0 %v1758
    %1778 = vmatprep.subr.mxu0 %v1761
    %1779 = vmatpush1.msra.mxu0 %v1760
    %1780 = vmatprep.subr.mxu0 %v1763
    %1781 = vmatpush1.msra.mxu0 %v1762
    %1782 = vmatprep.subr.mxu0 0.0
    %1783 = vmatpush1.msra.mxu0 0.0
    %1784 = vmatprep.subr.mxu0 0.0
    %1785 = vmatpush1.msra.mxu0 0.0
    %1786 = vmatprep.subr.mxu0 0.0
    %1787 = vmatpush1.msra.mxu0 0.0
    %1788 = vmatprep.subr.mxu0 0.0
    %1789 = vmatpush1.msra.mxu0 0.0
    %1790 = vmatprep.subr.mxu0 0.0
    %1791 = vmatpush1.msra.mxu0 0.0
    %1792 = vmatprep.subr.mxu0 0.0
    %1793 = vmatpush1.msra.mxu0 0.0
    %1794 = vmatprep.subr.mxu0 0.0
    %1795 = vmatpush1.msra.mxu0 0.0
    %1796 = vmatprep.subr.mxu0 0.0
    %1797 = vmatpush1.msra.mxu0 0.0
    %1798 = vmatprep.subr.mxu0 0.0
    %1799 = vmatpush1.msra.mxu0 0.0
    %1800 = vmatprep.subr.mxu0 0.0
    %1801 = vmatpush1.msra.mxu0 0.0
    %1802 = vmatprep.subr.mxu0 0.0
    %1803 = vmatpush1.msra.mxu0 0.0
    %1804 = vmatprep.subr.mxu0 0.0
    %1805 = vmatpush1.msra.mxu0 0.0
    %1806 = vmatprep.subr.mxu0 0.0
    %1807 = vmatpush1.msra.mxu0 0.0
    %1808 = vmatprep.subr.mxu0 0.0
    %1809 = vmatpush1.msra.mxu0 0.0
    %1810 = vmatprep.subr.mxu0 0.0
    %1811 = vmatpush1.msra.mxu0 0.0
    %1812 = vmatprep.subr.mxu0 0.0
    %1813 = vmatpush1.msra.mxu0 0.0
    %1814 = vmatprep.subr.mxu0 0.0
    %1815 = vmatpush1.msra.mxu0 0.0
    %1816 = vmatprep.subr.mxu0 0.0
    %1817 = vmatpush1.msra.mxu0 0.0
    %1818 = vmatprep.subr.mxu0 0.0
    %1819 = vmatpush1.msra.mxu0 0.0
    %1820 = vmatprep.subr.mxu0 0.0
    %1821 = vmatpush1.msra.mxu0 0.0
    %1822 = vmatprep.subr.mxu0 0.0
    %1823 = vmatpush1.msra.mxu0 0.0
    %1824 = vmatprep.subr.mxu0 0.0
    %1825 = vmatpush1.msra.mxu0 0.0
    %1826 = vmatprep.subr.mxu0 0.0
    %1827 = vmatpush1.msra.mxu0 0.0
    %1828 = vmatprep.subr.mxu0 0.0
    %1829 = vmatpush1.msra.mxu0 0.0
    %1830 = vmatprep.mubr.f32.mxu0 0.0
    %1831 = vmatmul.mubr.f32.gmra.mrb[0].mxu0 %v1764
    %v1832 = vpop.f32.mrb[0].mxu0
    %v1833 = vadd.f32 0.0, %v1832
    %v1834 = vpop.f32.mrb[0].mxu0
    %v1835 = vadd.f32 0.0, %v1834
    %1836 = vdwg.mxu0
    %v1837 = vadd.f32 %v1746, %v1833
    %v1838 = vadd.f32 %v1747, %v1835
    %v1839 = vxor.u32 %v1837, 2147483648
    %v1840 = vxor.u32 %v1838, 2147483648
    %v1841 = vmul.f32 %v1839, 1.442695
    %v1842 = vpow.pop %v1841
    %v1843 = vmul.f32 %v1840, 1.442695
    %v1844 = vpow.pop %v1843
    %v1845 = vadd.f32 %v1842, 1.0
    %v1846 = vadd.f32 %v1844, 1.0
    %v1847 = vrcp.pop %v1845
    %v1848 = vmul.f32 1.0, %v1847
    %v1849 = vrcp.pop %v1846
    %v1850 = vmul.f32 1.0, %v1849
    %v1851 = vmul.f32 %v1850, 2.0
    %v1852 = vsub.f32 %v1851, 1.0
    %v1853 = vmul.f32 %v1848, %v1738
    %v1854 = vmul.f32 %v1848, %v1852
    %1856 = vrot.lane.b32.xlu0 %v1854, 64
    %v1857 = vpop.permute.xlu0 %1856
    %v1859 = vadd.f32 %v1853, %v1857
    %v1860 = vtanh.pop %v1859
    %v1861 = vmul.f32 %v1850, %v1860
    %1863 = vrot.lane.b32.xlu0 %v1861, 64
    %v1864 = vpop.permute.xlu0 %1863
    %1866 = vst.msk [vmem:[#allocation3 + $0x20] sm:$0xff] %vm351, %v1864
    %v1867 = vld [vmem:[#allocation2 + $0xe0] sm:$0xff]
    %v1868 = vld [vmem:[#allocation2 + $0xe8] sm:$0xff]
    %v1869 = vld [vmem:[#allocation10] sm:$0xff]
    %v1870 = vld [vmem:[#allocation10 + $0x8] sm:$0xff]
    %v1871 = vld [vmem:[#allocation10 + $0x10] sm:$0xff]
    %v1872 = vld [vmem:[#allocation10 + $0x18] sm:$0xff]
    %v1873 = vld [vmem:[#allocation10 + $0x20] sm:$0xff]
    %v1874 = vld [vmem:[#allocation10 + $0x28] sm:$0xff]
    %v1875 = vld [vmem:[#allocation10 + $0x30] sm:$0xff]
    %v1876 = vld [vmem:[#allocation10 + $0x38] sm:$0xff]
    %v1877 = vld [vmem:[#allocation10 + $0x40] sm:$0xff]
    %v1878 = vld [vmem:[#allocation10 + $0x48] sm:$0xff]
    %v1879 = vld [vmem:[#allocation10 + $0x50] sm:$0xff]
    %v1880 = vld [vmem:[#allocation10 + $0x58] sm:$0xff]
    %v1881 = vld [vmem:[#allocation10 + $0x60] sm:$0xff]
    %v1882 = vld [vmem:[#allocation10 + $0x68] sm:$0xff]
    %v1883 = vld [vmem:[#allocation10 + $0x70] sm:$0xff]
    %v1884 = vld [vmem:[#allocation10 + $0x78] sm:$0xff]
    %v1885 = vsel %vm351, %v1864, 0
    %1887 = vmatprep.subr.mxu0 %v1870
    %1888 = vmatpush1.msra.mxu0 %v1869
    %1889 = vmatprep.subr.mxu0 %v1872
    %1890 = vmatpush1.msra.mxu0 %v1871
    %1891 = vmatprep.subr.mxu0 %v1874
    %1892 = vmatpush1.msra.mxu0 %v1873
    %1893 = vmatprep.subr.mxu0 %v1876
    %1894 = vmatpush1.msra.mxu0 %v1875
    %1895 = vmatprep.subr.mxu0 %v1878
    %1896 = vmatpush1.msra.mxu0 %v1877
    %1897 = vmatprep.subr.mxu0 %v1880
    %1898 = vmatpush1.msra.mxu0 %v1879
    %1899 = vmatprep.subr.mxu0 %v1882
    %1900 = vmatpush1.msra.mxu0 %v1881
    %1901 = vmatprep.subr.mxu0 %v1884
    %1902 = vmatpush1.msra.mxu0 %v1883
    %1903 = vmatprep.subr.mxu0 0.0
    %1904 = vmatpush1.msra.mxu0 0.0
    %1905 = vmatprep.subr.mxu0 0.0
    %1906 = vmatpush1.msra.mxu0 0.0
    %1907 = vmatprep.subr.mxu0 0.0
    %1908 = vmatpush1.msra.mxu0 0.0
    %1909 = vmatprep.subr.mxu0 0.0
    %1910 = vmatpush1.msra.mxu0 0.0
    %1911 = vmatprep.subr.mxu0 0.0
    %1912 = vmatpush1.msra.mxu0 0.0
    %1913 = vmatprep.subr.mxu0 0.0
    %1914 = vmatpush1.msra.mxu0 0.0
    %1915 = vmatprep.subr.mxu0 0.0
    %1916 = vmatpush1.msra.mxu0 0.0
    %1917 = vmatprep.subr.mxu0 0.0
    %1918 = vmatpush1.msra.mxu0 0.0
    %1919 = vmatprep.subr.mxu0 0.0
    %1920 = vmatpush1.msra.mxu0 0.0
    %1921 = vmatprep.subr.mxu0 0.0
    %1922 = vmatpush1.msra.mxu0 0.0
    %1923 = vmatprep.subr.mxu0 0.0
    %1924 = vmatpush1.msra.mxu0 0.0
    %1925 = vmatprep.subr.mxu0 0.0
    %1926 = vmatpush1.msra.mxu0 0.0
    %1927 = vmatprep.subr.mxu0 0.0
    %1928 = vmatpush1.msra.mxu0 0.0
    %1929 = vmatprep.subr.mxu0 0.0
    %1930 = vmatpush1.msra.mxu0 0.0
    %1931 = vmatprep.subr.mxu0 0.0
    %1932 = vmatpush1.msra.mxu0 0.0
    %1933 = vmatprep.subr.mxu0 0.0
    %1934 = vmatpush1.msra.mxu0 0.0
    %1935 = vmatprep.subr.mxu0 0.0
    %1936 = vmatpush1.msra.mxu0 0.0
    %1937 = vmatprep.subr.mxu0 0.0
    %1938 = vmatpush1.msra.mxu0 0.0
    %1939 = vmatprep.subr.mxu0 0.0
    %1940 = vmatpush1.msra.mxu0 0.0
    %1941 = vmatprep.subr.mxu0 0.0
    %1942 = vmatpush1.msra.mxu0 0.0
    %1943 = vmatprep.subr.mxu0 0.0
    %1944 = vmatpush1.msra.mxu0 0.0
    %1945 = vmatprep.subr.mxu0 0.0
    %1946 = vmatpush1.msra.mxu0 0.0
    %1947 = vmatprep.subr.mxu0 0.0
    %1948 = vmatpush1.msra.mxu0 0.0
    %1949 = vmatprep.subr.mxu0 0.0
    %1950 = vmatpush1.msra.mxu0 0.0
    %1951 = vmatprep.mubr.f32.mxu0 0.0
    %1952 = vmatmul.mubr.f32.gmra.mrb[0].mxu0 %v1885
    %v1953 = vpop.f32.mrb[0].mxu0
    %v1954 = vadd.f32 0.0, %v1953
    %v1955 = vpop.f32.mrb[0].mxu0
    %v1956 = vadd.f32 0.0, %v1955
    %1957 = vdwg.mxu0
    %v1958 = vadd.f32 %v1867, %v1954
    %v1959 = vadd.f32 %v1868, %v1956
    %v1960 = vxor.u32 %v1958, 2147483648
    %v1961 = vxor.u32 %v1959, 2147483648
    %v1962 = vmul.f32 %v1960, 1.442695
    %v1963 = vpow.pop %v1962
    %v1964 = vmul.f32 %v1961, 1.442695
    %v1965 = vpow.pop %v1964
    %v1966 = vadd.f32 %v1963, 1.0
    %v1967 = vadd.f32 %v1965, 1.0
    %v1968 = vrcp.pop %v1966
    %v1969 = vmul.f32 1.0, %v1968
    %v1970 = vrcp.pop %v1967
    %v1971 = vmul.f32 1.0, %v1970
    %v1972 = vmul.f32 %v1971, 2.0
    %v1973 = vsub.f32 %v1972, 1.0
    %v1974 = vmul.f32 %v1969, %v1859
    %v1975 = vmul.f32 %v1969, %v1973
    %1977 = vrot.lane.b32.xlu0 %v1975, 64
    %v1978 = vpop.permute.xlu0 %1977
    %v1980 = vadd.f32 %v1974, %v1978
    %v1981 = vtanh.pop %v1980
    %v1982 = vmul.f32 %v1971, %v1981
    %1984 = vrot.lane.b32.xlu0 %v1982, 64
    %v1985 = vpop.permute.xlu0 %1984
    %1987 = vst.msk [vmem:[#allocation3 + $0x28] sm:$0xff] %vm351, %v1985
    %v1988 = vld [vmem:[#allocation2 + $0xf0] sm:$0xff]
    %v1989 = vld [vmem:[#allocation2 + $0xf8] sm:$0xff]
    %v1990 = vld [vmem:[#allocation10] sm:$0xff]
    %v1991 = vld [vmem:[#allocation10 + $0x8] sm:$0xff]
    %v1992 = vld [vmem:[#allocation10 + $0x10] sm:$0xff]
    %v1993 = vld [vmem:[#allocation10 + $0x18] sm:$0xff]
    %v1994 = vld [vmem:[#allocation10 + $0x20] sm:$0xff]
    %v1995 = vld [vmem:[#allocation10 + $0x28] sm:$0xff]
    %v1996 = vld [vmem:[#allocation10 + $0x30] sm:$0xff]
    %v1997 = vld [vmem:[#allocation10 + $0x38] sm:$0xff]
    %v1998 = vld [vmem:[#allocation10 + $0x40] sm:$0xff]
    %v1999 = vld [vmem:[#allocation10 + $0x48] sm:$0xff]
    %v2000 = vld [vmem:[#allocation10 + $0x50] sm:$0xff]
    %v2001 = vld [vmem:[#allocation10 + $0x58] sm:$0xff]
    %v2002 = vld [vmem:[#allocation10 + $0x60] sm:$0xff]
    %v2003 = vld [vmem:[#allocation10 + $0x68] sm:$0xff]
    %v2004 = vld [vmem:[#allocation10 + $0x70] sm:$0xff]
    %v2005 = vld [vmem:[#allocation10 + $0x78] sm:$0xff]
    %v2006 = vsel %vm351, %v1985, 0
    %2008 = vmatprep.subr.mxu0 %v1991
    %2009 = vmatpush1.msra.mxu0 %v1990
    %2010 = vmatprep.subr.mxu0 %v1993
    %2011 = vmatpush1.msra.mxu0 %v1992
    %2012 = vmatprep.subr.mxu0 %v1995
    %2013 = vmatpush1.msra.mxu0 %v1994
    %2014 = vmatprep.subr.mxu0 %v1997
    %2015 = vmatpush1.msra.mxu0 %v1996
    %2016 = vmatprep.subr.mxu0 %v1999
    %2017 = vmatpush1.msra.mxu0 %v1998
    %2018 = vmatprep.subr.mxu0 %v2001
    %2019 = vmatpush1.msra.mxu0 %v2000
    %2020 = vmatprep.subr.mxu0 %v2003
    %2021 = vmatpush1.msra.mxu0 %v2002
    %2022 = vmatprep.subr.mxu0 %v2005
    %2023 = vmatpush1.msra.mxu0 %v2004
    %2024 = vmatprep.subr.mxu0 0.0
    %2025 = vmatpush1.msra.mxu0 0.0
    %2026 = vmatprep.subr.mxu0 0.0
    %2027 = vmatpush1.msra.mxu0 0.0
    %2028 = vmatprep.subr.mxu0 0.0
    %2029 = vmatpush1.msra.mxu0 0.0
    %2030 = vmatprep.subr.mxu0 0.0
    %2031 = vmatpush1.msra.mxu0 0.0
    %2032 = vmatprep.subr.mxu0 0.0
    %2033 = vmatpush1.msra.mxu0 0.0
    %2034 = vmatprep.subr.mxu0 0.0
    %2035 = vmatpush1.msra.mxu0 0.0
    %2036 = vmatprep.subr.mxu0 0.0
    %2037 = vmatpush1.msra.mxu0 0.0
    %2038 = vmatprep.subr.mxu0 0.0
    %2039 = vmatpush1.msra.mxu0 0.0
    %2040 = vmatprep.subr.mxu0 0.0
    %2041 = vmatpush1.msra.mxu0 0.0
    %2042 = vmatprep.subr.mxu0 0.0
    %2043 = vmatpush1.msra.mxu0 0.0
    %2044 = vmatprep.subr.mxu0 0.0
    %2045 = vmatpush1.msra.mxu0 0.0
    %2046 = vmatprep.subr.mxu0 0.0
    %2047 = vmatpush1.msra.mxu0 0.0
    %2048 = vmatprep.subr.mxu0 0.0
    %2049 = vmatpush1.msra.mxu0 0.0
    %2050 = vmatprep.subr.mxu0 0.0
    %2051 = vmatpush1.msra.mxu0 0.0
    %2052 = vmatprep.subr.mxu0 0.0
    %2053 = vmatpush1.msra.mxu0 0.0
    %2054 = vmatprep.subr.mxu0 0.0
    %2055 = vmatpush1.msra.mxu0 0.0
    %2056 = vmatprep.subr.mxu0 0.0
    %2057 = vmatpush1.msra.mxu0 0.0
    %2058 = vmatprep.subr.mxu0 0.0
    %2059 = vmatpush1.msra.mxu0 0.0
    %2060 = vmatprep.subr.mxu0 0.0
    %2061 = vmatpush1.msra.mxu0 0.0
    %2062 = vmatprep.subr.mxu0 0.0
    %2063 = vmatpush1.msra.mxu0 0.0
    %2064 = vmatprep.subr.mxu0 0.0
    %2065 = vmatpush1.msra.mxu0 0.0
    %2066 = vmatprep.subr.mxu0 0.0
    %2067 = vmatpush1.msra.mxu0 0.0
    %2068 = vmatprep.subr.mxu0 0.0
    %2069 = vmatpush1.msra.mxu0 0.0
    %2070 = vmatprep.subr.mxu0 0.0
    %2071 = vmatpush1.msra.mxu0 0.0
    %2072 = vmatprep.mubr.f32.mxu0 0.0
    %2073 = vmatmul.mubr.f32.gmra.mrb[0].mxu0 %v2006
    %v2074 = vpop.f32.mrb[0].mxu0
    %v2075 = vadd.f32 0.0, %v2074
    %v2076 = vpop.f32.mrb[0].mxu0
    %v2077 = vadd.f32 0.0, %v2076
    %2078 = vdwg.mxu0
    %v2079 = vadd.f32 %v1988, %v2075
    %v2080 = vadd.f32 %v1989, %v2077
    %v2081 = vxor.u32 %v2079, 2147483648
    %v2082 = vxor.u32 %v2080, 2147483648
    %v2083 = vmul.f32 %v2081, 1.442695
    %v2084 = vpow.pop %v2083
    %v2085 = vmul.f32 %v2082, 1.442695
    %v2086 = vpow.pop %v2085
    %v2087 = vadd.f32 %v2084, 1.0
    %v2088 = vadd.f32 %v2086, 1.0
    %v2089 = vrcp.pop %v2087
    %v2090 = vmul.f32 1.0, %v2089
    %v2091 = vrcp.pop %v2088
    %v2092 = vmul.f32 1.0, %v2091
    %v2093 = vmul.f32 %v2092, 2.0
    %v2094 = vsub.f32 %v2093, 1.0
    %v2095 = vmul.f32 %v2090, %v1980
    %v2096 = vmul.f32 %v2090, %v2094
    %2098 = vrot.lane.b32.xlu0 %v2096, 64
    %v2099 = vpop.permute.xlu0 %2098
    %v2101 = vadd.f32 %v2095, %v2099
    %v2102 = vtanh.pop %v2101
    %v2103 = vmul.f32 %v2092, %v2102
    %2105 = vrot.lane.b32.xlu0 %v2103, 64
    %v2106 = vpop.permute.xlu0 %2105
    %2108 = vst.msk [vmem:[#allocation3 + $0x30] sm:$0xff] %vm351, %v2106
    %v2109 = vld [vmem:[#allocation3] sm:$0xff]
    %v2110 = vld [vmem:[#allocation3 + $0x8] sm:$0xff]
    %v2111 = vld [vmem:[#allocation3 + $0x10] sm:$0xff]
    %v2112 = vld [vmem:[#allocation3 + $0x18] sm:$0xff]
    %v2113 = vld [vmem:[#allocation3 + $0x20] sm:$0xff]
    %v2114 = vld [vmem:[#allocation3 + $0x28] sm:$0xff]
    %v2115 = vld [vmem:[#allocation3 + $0x30] sm:$0xff]
    %v2116 = vld [vmem:[#allocation11] sm:$0xff]
    %v2117 = vld [vmem:[#allocation11 + $0x8] sm:$0xff]
    %v2118 = vld [vmem:[#allocation11 + $0x10] sm:$0xff]
    %v2119 = vld [vmem:[#allocation11 + $0x18] sm:$0xff]
    %v2120 = vld [vmem:[#allocation11 + $0x20] sm:$0xff]
    %v2121 = vld [vmem:[#allocation11 + $0x28] sm:$0xff]
    %v2122 = vld [vmem:[#allocation11 + $0x30] sm:$0xff]
    %v2123 = vld [vmem:[#allocation11 + $0x38] sm:$0xff]
    %s2124 = sld [smem:[#allocation4]]
    %v2125 = vstv %s2124
    %v2127 = vsel %vm351, %v2109, 0
    %v2130 = vsel %vm351, %v2110, 0
    %v2133 = vsel %vm351, %v2111, 0
    %v2136 = vsel %vm351, %v2112, 0
    %v2139 = vsel %vm351, %v2113, 0
    %v2142 = vsel %vm351, %v2114, 0
    %v2145 = vsel %vm351, %v2115, 0
    %2147 = vmatprep.subr.mxu0 0.0
    %2148 = vmatpush1.msra.mxu0 %v2116
    %2149 = vmatprep.subr.mxu0 0.0
    %2150 = vmatpush1.msra.mxu0 %v2117
    %2151 = vmatprep.subr.mxu0 0.0
    %2152 = vmatpush1.msra.mxu0 %v2118
    %2153 = vmatprep.subr.mxu0 0.0
    %2154 = vmatpush1.msra.mxu0 %v2119
    %2155 = vmatprep.subr.mxu0 0.0
    %2156 = vmatpush1.msra.mxu0 %v2120
    %2157 = vmatprep.subr.mxu0 0.0
    %2158 = vmatpush1.msra.mxu0 %v2121
    %2159 = vmatprep.subr.mxu0 0.0
    %2160 = vmatpush1.msra.mxu0 %v2122
    %2161 = vmatprep.subr.mxu0 0.0
    %2162 = vmatpush1.msra.mxu0 %v2123
    %2163 = vmatprep.subr.mxu0 0.0
    %2164 = vmatpush1.msra.mxu0 0.0
    %2165 = vmatprep.subr.mxu0 0.0
    %2166 = vmatpush1.msra.mxu0 0.0
    %2167 = vmatprep.subr.mxu0 0.0
    %2168 = vmatpush1.msra.mxu0 0.0
    %2169 = vmatprep.subr.mxu0 0.0
    %2170 = vmatpush1.msra.mxu0 0.0
    %2171 = vmatprep.subr.mxu0 0.0
    %2172 = vmatpush1.msra.mxu0 0.0
    %2173 = vmatprep.subr.mxu0 0.0
    %2174 = vmatpush1.msra.mxu0 0.0
    %2175 = vmatprep.subr.mxu0 0.0
    %2176 = vmatpush1.msra.mxu0 0.0
    %2177 = vmatprep.subr.mxu0 0.0
    %2178 = vmatpush1.msra.mxu0 0.0
    %2179 = vmatprep.subr.mxu0 0.0
    %2180 = vmatpush1.msra.mxu0 0.0
    %2181 = vmatprep.subr.mxu0 0.0
    %2182 = vmatpush1.msra.mxu0 0.0
    %2183 = vmatprep.subr.mxu0 0.0
    %2184 = vmatpush1.msra.mxu0 0.0
    %2185 = vmatprep.subr.mxu0 0.0
    %2186 = vmatpush1.msra.mxu0 0.0
    %2187 = vmatprep.subr.mxu0 0.0
    %2188 = vmatpush1.msra.mxu0 0.0
    %2189 = vmatprep.subr.mxu0 0.0
    %2190 = vmatpush1.msra.mxu0 0.0
    %2191 = vmatprep.subr.mxu0 0.0
    %2192 = vmatpush1.msra.mxu0 0.0
    %2193 = vmatprep.subr.mxu0 0.0
    %2194 = vmatpush1.msra.mxu0 0.0
    %2195 = vmatprep.subr.mxu0 0.0
    %2196 = vmatpush1.msra.mxu0 0.0
    %2197 = vmatprep.subr.mxu0 0.0
    %2198 = vmatpush1.msra.mxu0 0.0
    %2199 = vmatprep.subr.mxu0 0.0
    %2200 = vmatpush1.msra.mxu0 0.0
    %2201 = vmatprep.subr.mxu0 0.0
    %2202 = vmatpush1.msra.mxu0 0.0
    %2203 = vmatprep.subr.mxu0 0.0
    %2204 = vmatpush1.msra.mxu0 0.0
    %2205 = vmatprep.subr.mxu0 0.0
    %2206 = vmatpush1.msra.mxu0 0.0
    %2207 = vmatprep.subr.mxu0 0.0
    %2208 = vmatpush1.msra.mxu0 0.0
    %2209 = vmatprep.subr.mxu0 0.0
    %2210 = vmatpush1.msra.mxu0 0.0
    %2211 = vmatprep.mubr.f32.mxu0 0.0
    %2212 = vmatmul.mubr.f32.gmra.mrb[0].mxu0 %v2127
    %v2213 = vpop.f32.mrb[0].mxu0
    %v2214 = vadd.f32 %v2125, %v2213
    %v2215 = vpop.f32.mrb[0].mxu0
    %2216 = vmatprep.mubr.f32.mxu0 0.0
    %2217 = vmatmul.mubr.f32.gmra.mrb[0].mxu0 %v2130
    %v2218 = vpop.f32.mrb[0].mxu0
    %v2219 = vadd.f32 %v2125, %v2218
    %v2220 = vpop.f32.mrb[0].mxu0
    %2221 = vmatprep.mubr.f32.mxu0 0.0
    %2222 = vmatmul.mubr.f32.gmra.mrb[0].mxu0 %v2133
    %v2223 = vpop.f32.mrb[0].mxu0
    %v2224 = vadd.f32 %v2125, %v2223
    %v2225 = vpop.f32.mrb[0].mxu0
    %2226 = vmatprep.mubr.f32.mxu0 0.0
    %2227 = vmatmul.mubr.f32.gmra.mrb[0].mxu0 %v2136
    %v2228 = vpop.f32.mrb[0].mxu0
    %v2229 = vadd.f32 %v2125, %v2228
    %v2230 = vpop.f32.mrb[0].mxu0
    %2231 = vmatprep.mubr.f32.mxu0 0.0
    %2232 = vmatmul.mubr.f32.gmra.mrb[0].mxu0 %v2139
    %v2233 = vpop.f32.mrb[0].mxu0
    %v2234 = vadd.f32 %v2125, %v2233
    %v2235 = vpop.f32.mrb[0].mxu0
    %2236 = vmatprep.mubr.f32.mxu0 0.0
    %2237 = vmatmul.mubr.f32.gmra.mrb[0].mxu0 %v2142
    %v2238 = vpop.f32.mrb[0].mxu0
    %v2239 = vadd.f32 %v2125, %v2238
    %v2240 = vpop.f32.mrb[0].mxu0
    %2241 = vmatprep.mubr.f32.mxu0 0.0
    %2242 = vmatmul.mubr.f32.gmra.mrb[0].mxu0 %v2145
    %v2243 = vpop.f32.mrb[0].mxu0
    %v2244 = vadd.f32 %v2125, %v2243
    %v2245 = vpop.f32.mrb[0].mxu0
    %2246 = vdwg.mxu0
    %2247 = vst [vmem:[#allocation13] sm:$0xff] %v2214
    %2248 = vst [vmem:[#allocation13 + $0x8] sm:$0xff] %v2219
    %2249 = vst [vmem:[#allocation13 + $0x10] sm:$0xff] %v2224
    %2250 = vst [vmem:[#allocation13 + $0x18] sm:$0xff] %v2229
    %2251 = vst [vmem:[#allocation13 + $0x20] sm:$0xff] %v2234
    %2252 = vst [vmem:[#allocation13 + $0x28] sm:$0xff] %v2239
    %2253 = vst [vmem:[#allocation13 + $0x30] sm:$0xff] %v2244
    // Predicated region
    $region42: #{tpu_custom_call.1} parent=1 // pred_check
      _
    $region43: #{tpu_custom_call.1} parent=1 // pred_check_branch
      %2255 = sbr.rel (0) target = $region45
    $region44: #{tpu_custom_call.1} parent=1 // pred_region
      %s2257 = ssub.s32 896, 896
      %2258 = vsyncadd [#allocation7], %s2257
      %s2259 = sshll.u32 [#allocation13], 4
      %s2260 = int_to_ptr.vmem [resolvable:$true] %s2259
      %2265 = dma.vmem_to_hbm [thread:$0]  %s2260, 896, %s6, [#allocation7], 128, 128, 8
    $region45: #{tpu_custom_call.1} parent=1 // pred_fallthru
      _
    // Predicated region
    $region46: #{tpu_custom_call.1} parent=1 // pred_check
      _
    $region47: #{tpu_custom_call.1} parent=1 // pred_check_branch
      %2267 = sbr.rel (0) target = $region49
    $region48: #{tpu_custom_call.1} parent=1 // pred_region
      %2268 = dma.done [#allocation7], 896
    $region49: #{tpu_custom_call.1} parent=1 // pred_fallthru
      _
    %2269 = vsyncpa [#allocation6], 1
    %2270 = vsyncpa [#allocation9], 1
    %2271 = vsyncpa [#allocation12], 1
    %2272 = vsyncpa [#allocation7], 1

</llo_original>
